<compile_context>
chip_gen: v7x
topology: tpu7x:2x2x1
jax: 0.10.0
libtpu: 0.0.40
codegen_flags: <defaults>
</compile_context>

<pallas_src>
import functools

import jax
import jax.numpy as jnp
import numpy as np
from jax.experimental import pallas as pl
from jax.experimental.pallas import tpu as pltpu

EPS = 1e-5  # nn.BatchNorm2d default eps


# ----------------------------------------------------------------------------
# in-kernel helpers
# ----------------------------------------------------------------------------
def _conv3x3_flat(a, w_mat, W, w_pos):
    """3x3 / stride-1 / pad-1 conv on one image, channels-major flat layout.

    a:      (Cin, H*W) float32, activation (already BN+ReLU'd)
    w_mat:  (Cout, 9*Cin) bfloat16, column index = (kh*3+kw)*Cin + ci
    W:      static image width
    w_pos:  (1, H*W) int32, w-coordinate (p % W) of every flat position
    returns (Cout, H*W) float32
    """
    Cin, HW = a.shape
    # Flat zero halo of width W+1 on both sides handles the top/bottom (kh)
    # out-of-range rows; only row-edge wraparound (kw taps) needs masking.
    halo = jnp.zeros((Cin, W + 1), jnp.float32)
    padded = jnp.concatenate([halo, a, halo], axis=1)        # (Cin, HW + 2W + 2)

    taps = []
    for kh in range(3):
        for kw in range(3):
            start = (W + 1) + (kh - 1) * W + (kw - 1)        # static lane offset
            t = padded[:, start:start + HW]                  # (Cin, HW)
            if kw == 0:                                      # source col w-1 < 0
                t = jnp.where(w_pos == 0, 0.0, t)
            elif kw == 2:                                    # source col w+1 >= W
                t = jnp.where(w_pos == W - 1, 0.0, t)
            taps.append(t)
    patches = jnp.concatenate(taps, axis=0).astype(jnp.bfloat16)   # (9*Cin, HW)

    # Single MXU contraction, K = 9*Cin, f32 accumulation.
    return jnp.dot(w_mat, patches, preferred_element_type=jnp.float32)


def _centered_stats(v):
    """Per-image, per-channel (mean, sum of squared deviations)."""
    m = jnp.mean(v, axis=-1, keepdims=True)                  # (C, 1)
    ssd = jnp.sum((v - m) ** 2, axis=-1, keepdims=True)      # (C, 1)
    return m, ssd


# ----------------------------------------------------------------------------
# kernels (grid = (N,), one image per step, fully parallel)
# ----------------------------------------------------------------------------
def _stats_kernel(x_ref, mean_ref, ssd_ref):
    v = x_ref[0].astype(jnp.float32)                         # (C, HW)
    m, ssd = _centered_stats(v)
    mean_ref[0] = m
    ssd_ref[0] = ssd


def _bn_conv_stats_kernel(x_ref, sc_ref, sh_ref, w_ref,
                          y_ref, mean_ref, ssd_ref, *, W):
    x = x_ref[0].astype(jnp.float32)                         # (Cin, HW)
    a = jnp.maximum(x * sc_ref[...] + sh_ref[...], 0.0)      # BN1 + ReLU (f32, lane-dense)
    HW = a.shape[-1]
    w_pos = jax.lax.broadcasted_iota(jnp.int32, (1, HW), 1) % W
    y = _conv3x3_flat(a, w_ref[...], W, w_pos)               # (Cout, HW) f32
    y_ref[0] = y
    m, ssd = _centered_stats(y)                              # BN2 stats of conv1 output
    mean_ref[0] = m
    ssd_ref[0] = ssd


def _bn_conv_res_kernel(y1_ref, x_ref, sc_ref, sh_ref, w_ref, o_ref, *, W):
    a = jnp.maximum(y1_ref[0] * sc_ref[...] + sh_ref[...], 0.0)   # BN2 + ReLU
    HW = a.shape[-1]
    w_pos = jax.lax.broadcasted_iota(jnp.int32, (1, HW), 1) % W
    y2 = _conv3x3_flat(a, w_ref[...], W, w_pos)              # (Cout, HW) f32
    o_ref[0] = y2 + x_ref[0]                                 # residual add, lane-dense store


# ----------------------------------------------------------------------------
# wrapper
# ----------------------------------------------------------------------------
def _bn_affine(mean_i, ssd_i, gamma, beta, N, HW):
    """Combine per-image centered stats (Chan's formula) -> BN scale/shift."""
    mean = jnp.mean(mean_i, axis=0)                                   # (C, 1)
    total_ssd = jnp.sum(ssd_i, axis=0) + HW * jnp.sum((mean_i - mean) ** 2, axis=0)
    var = total_ssd / (N * HW)                                        # biased (training BN)
    scale = gamma.reshape(-1, 1).astype(jnp.float32) * jax.lax.rsqrt(var + EPS)
    shift = beta.reshape(-1, 1).astype(jnp.float32) - mean * scale
    return scale, shift


@jax.jit
def preact_basic_block(x_nchw, w1_oihw, g1, b1, w2_oihw, g2, b2):
    N, C1, H, W = x_nchw.shape
    C2 = w1_oihw.shape[0]
    assert C1 == C2, "stride=1 / downsample=None path requires inplanes == planes"
    HW = H * W

    # NCHW -> (N, C, H*W): contiguous reshape, no transpose pass through HBM.
    x = x_nchw.reshape(N, C1, HW).astype(jnp.float32)
    # OIHW -> (Cout, 9*Cin), tap-major columns; bf16 for the MXU fast path.
    w1m = jnp.transpose(w1_oihw, (0, 2, 3, 1)).reshape(C2, 9 * C1).astype(jnp.bfloat16)
    w2m = jnp.transpose(w2_oihw, (0, 2, 3, 1)).reshape(C2, 9 * C2).astype(jnp.bfloat16)

    cparams = pltpu.CompilerParams(
        dimension_semantics=("parallel",),        # images independent -> megacore split
        vmem_limit_bytes=48 * 1024 * 1024,        # fits v7x's 64 MiB VMEM with headroom
    )

    img_spec = lambda C: pl.BlockSpec((1, C, HW), lambda n: (n, 0, 0))
    chan_spec = lambda C: pl.BlockSpec((C, 1), lambda n: (0, 0))
    stat_spec = lambda C: pl.BlockSpec((1, C, 1), lambda n: (n, 0, 0))

    # ---- pass 1: per-image BN1 statistics of x ------------------------------
    m1, ss1 = pl.pallas_call(
        _stats_kernel,
        grid=(N,),
        in_specs=[img_spec(C1)],
        out_specs=(stat_spec(C1), stat_spec(C1)),
        out_shape=(jax.ShapeDtypeStruct((N, C1, 1), jnp.float32),
                   jax.ShapeDtypeStruct((N, C1, 1), jnp.float32)),
        compiler_params=cparams,
    )(x)
    scale1, shift1 = _bn_affine(m1, ss1, g1, b1, N, HW)

    # ---- pass 2: BN1 + ReLU + conv1, plus per-image BN2 statistics of y1 ----
    y1, m2, ss2 = pl.pallas_call(
        functools.partial(_bn_conv_stats_kernel, W=W),
        grid=(N,),
        in_specs=[img_spec(C1), chan_spec(C1), chan_spec(C1),
                  pl.BlockSpec((C2, 9 * C1), lambda n: (0, 0))],
        out_specs=(img_spec(C2), stat_spec(C2), stat_spec(C2)),
        out_shape=(jax.ShapeDtypeStruct((N, C2, HW), jnp.float32),
                   jax.ShapeDtypeStruct((N, C2, 1), jnp.float32),
                   jax.ShapeDtypeStruct((N, C2, 1), jnp.float32)),
        compiler_params=cparams,
    )(x, scale1, shift1, w1m)
    scale2, shift2 = _bn_affine(m2, ss2, g2, b2, N, HW)

    # ---- pass 3: BN2 + ReLU + conv2 + residual add --------------------------
    out = pl.pallas_call(
        functools.partial(_bn_conv_res_kernel, W=W),
        grid=(N,),
        in_specs=[img_spec(C2), img_spec(C1), chan_spec(C2), chan_spec(C2),
                  pl.BlockSpec((C2, 9 * C2), lambda n: (0, 0))],
        out_specs=img_spec(C2),
        out_shape=jax.ShapeDtypeStruct((N, C2, HW), jnp.float32),
        compiler_params=cparams,
    )(y1, x, scale2, shift2, w2m)

    return out.reshape(N, C2, H, W)               # free reshape back to NCHW


# ----------------------------------------------------------------------------
# pure-JAX reference (NCHW, mirrors the PyTorch module in train() mode)
# ----------------------------------------------------------------------------
def reference(x, w1, g1, b1, w2, g2, b2):
    def bn_relu(v, g, b):
        mean = v.mean(axis=(0, 2, 3), keepdims=True)
        var = ((v - mean) ** 2).mean(axis=(0, 2, 3), keepdims=True)
        vn = (v - mean) / jnp.sqrt(var + EPS)
        return jnp.maximum(vn * g.reshape(1, -1, 1, 1) + b.reshape(1, -1, 1, 1), 0.0)

    def conv(v, w):
        return jax.lax.conv_general_dilated(
            v, w, window_strides=(1, 1), padding=((1, 1), (1, 1)),
            dimension_numbers=('NCHW', 'OIHW', 'NCHW'),
            precision=jax.lax.Precision.HIGHEST)

    a1 = bn_relu(x, g1, b1)
    y1 = conv(a1, w1)
    a2 = bn_relu(y1, g2, b2)
    y2 = conv(a2, w2)
    return y2 + x


if __name__ == "__main__":
    # Small shapes consistent with the module: inplanes == planes (required for
    # the residual add when downsample is None), stride = 1.
    N, C, H, W = 2, 8, 16, 16
    inplanes = planes = C

    key = jax.random.PRNGKey(0)
    kx, kw1, kw2, kg1, kb1, kg2, kb2 = jax.random.split(key, 7)

    x = jax.random.normal(kx, (N, inplanes, H, W), jnp.float32)
    # conv weights (bias=False), PyTorch OIHW layout
    w1 = 0.1 * jax.random.normal(kw1, (planes, inplanes, 3, 3), jnp.float32)
    w2 = 0.1 * jax.random.normal(kw2, (planes, planes, 3, 3), jnp.float32)
    # BN affine params (perturb away from the gamma=1, beta=0 defaults)
    g1 = 1.0 + 0.1 * jax.random.normal(kg1, (inplanes,), jnp.float32)
    b1 = 0.1 * jax.random.normal(kb1, (inplanes,), jnp.float32)
    g2 = 1.0 + 0.1 * jax.random.normal(kg2, (planes,), jnp.float32)
    b2 = 0.1 * jax.random.normal(kb2, (planes,), jnp.float32)

    out = preact_basic_block(x, w1, g1, b1, w2, g2, b2)
    out = jax.block_until_ready(out)

    ref = jax.block_until_ready(reference(x, w1, g1, b1, w2, g2, b2))
    assert out.shape == (N, planes, H, W), out.shape
    np.testing.assert_allclose(np.asarray(out), np.asarray(ref), atol=2e-2, rtol=2e-2)

    print("KERNEL_OK")
</pallas_src>

<mosaic_0001>
module attributes {stable_mosaic.version = 11 : i64} {
  func.func @_stats_kernel(%arg0: i32, %arg1: memref<1x8x256xf32, #tpu.memory_space<vmem>>, %arg2: memref<1x8x1xf32, #tpu.memory_space<vmem>>, %arg3: memref<1x8x1xf32, #tpu.memory_space<vmem>>) attributes {dimension_semantics = [#tpu.dimension_semantics<parallel>], iteration_bounds = array<i64: 2>, scalar_prefetch = 0 : i64, scratch_operands = 0 : i64, tpu.core_type = #tpu.core_type<tc>, window_params = [{transform_indices = @transform_0, window_bounds = array<i64: 1, 8, 256>}, {transform_indices = @transform_1, window_bounds = array<i64: 1, 8, 1>}, {transform_indices = @transform_2, window_bounds = array<i64: 1, 8, 1>}]} {
    %c0 = arith.constant 0 : index
    %c0_0 = arith.constant 0 : index
    %c0_1 = arith.constant 0 : index
    %0 = vector.load %arg1[%c0, %c0_0, %c0_1] : memref<1x8x256xf32, #tpu.memory_space<vmem>>, vector<1x8x256xf32>
    %1 = vector.shape_cast %0 : vector<1x8x256xf32> to vector<8x256xf32>
    %cst = arith.constant dense<0.000000e+00> : vector<8xf32>
    %2 = vector.multi_reduction <add>, %1, %cst [1] : vector<8x256xf32> to vector<8xf32>
    %3 = vector.shape_cast %2 : vector<8xf32> to vector<8x1xf32>
    %cst_2 = arith.constant 2.560000e+02 : f32
    %4 = vector.broadcast %cst_2 : f32 to vector<8x1xf32>
    %5 = arith.divf %3, %4 : vector<8x1xf32>
    %6 = vector.broadcast %5 : vector<8x1xf32> to vector<8x256xf32>
    %7 = arith.subf %1, %6 : vector<8x256xf32>
    %8 = arith.mulf %7, %7 : vector<8x256xf32>
    %cst_3 = arith.constant dense<0.000000e+00> : vector<8xf32>
    %9 = vector.multi_reduction <add>, %8, %cst_3 [1] : vector<8x256xf32> to vector<8xf32>
    %10 = vector.shape_cast %9 : vector<8xf32> to vector<8x1xf32>
    %c0_4 = arith.constant 0 : index
    %c0_5 = arith.constant 0 : index
    %c0_6 = arith.constant 0 : index
    %11 = vector.load %arg2[%c0_4, %c0_5, %c0_6] : memref<1x8x1xf32, #tpu.memory_space<vmem>>, vector<1x8x1xf32>
    %12 = vector.shape_cast %11 : vector<1x8x1xf32> to vector<8x1xf32>
    %13 = vector.shape_cast %5 : vector<8x1xf32> to vector<1x8x1xf32>
    tpu.vector_store %arg2[%c0_4, %c0_5, %c0_6], %13 {strides = array<i32>} : memref<1x8x1xf32, #tpu.memory_space<vmem>>, vector<1x8x1xf32>,
    %c0_7 = arith.constant 0 : index
    %c0_8 = arith.constant 0 : index
    %c0_9 = arith.constant 0 : index
    %14 = vector.load %arg3[%c0_7, %c0_8, %c0_9] : memref<1x8x1xf32, #tpu.memory_space<vmem>>, vector<1x8x1xf32>
    %15 = vector.shape_cast %14 : vector<1x8x1xf32> to vector<8x1xf32>
    %16 = vector.shape_cast %10 : vector<8x1xf32> to vector<1x8x1xf32>
    tpu.vector_store %arg3[%c0_7, %c0_8, %c0_9], %16 {strides = array<i32>} : memref<1x8x1xf32, #tpu.memory_space<vmem>>, vector<1x8x1xf32>,
    return
  }
  func.func @transform_0(%arg0: i32) -> (i32, i32, i32) {
    %c0_i32 = arith.constant 0 : i32
    %c0_i32_0 = arith.constant 0 : i32
    %c0_i32_1 = arith.constant 0 : i32
    return %arg0, %c0_i32, %c0_i32_0 : i32, i32, i32
  }
  func.func @transform_1(%arg0: i32) -> (i32, i32, i32) {
    %c0_i32 = arith.constant 0 : i32
    %c0_i32_0 = arith.constant 0 : i32
    %c0_i32_1 = arith.constant 0 : i32
    return %arg0, %c0_i32, %c0_i32_0 : i32, i32, i32
  }
  func.func @transform_2(%arg0: i32) -> (i32, i32, i32) {
    %c0_i32 = arith.constant 0 : i32
    %c0_i32_0 = arith.constant 0 : i32
    %c0_i32_1 = arith.constant 0 : i32
    return %arg0, %c0_i32, %c0_i32_0 : i32, i32, i32
  }
}

module attributes {stable_mosaic.version = 11 : i64} {
  func.func @_bn_conv_stats_kernel(%arg0: i32, %arg1: memref<1x8x256xf32, #tpu.memory_space<vmem>>, %arg2: memref<8x1xf32, #tpu.memory_space<vmem>>, %arg3: memref<8x1xf32, #tpu.memory_space<vmem>>, %arg4: memref<8x72xbf16, #tpu.memory_space<vmem>>, %arg5: memref<1x8x256xf32, #tpu.memory_space<vmem>>, %arg6: memref<1x8x1xf32, #tpu.memory_space<vmem>>, %arg7: memref<1x8x1xf32, #tpu.memory_space<vmem>>) attributes {dimension_semantics = [#tpu.dimension_semantics<parallel>], iteration_bounds = array<i64: 2>, scalar_prefetch = 0 : i64, scratch_operands = 0 : i64, tpu.core_type = #tpu.core_type<tc>, window_params = [{transform_indices = @transform_0, window_bounds = array<i64: 1, 8, 256>}, {pipeline_mode = #tpu.pipeline_mode<synchronous>, transform_indices = @transform_1, window_bounds = array<i64: 8, 1>}, {pipeline_mode = #tpu.pipeline_mode<synchronous>, transform_indices = @transform_2, window_bounds = array<i64: 8, 1>}, {pipeline_mode = #tpu.pipeline_mode<synchronous>, transform_indices = @transform_3, window_bounds = array<i64: 8, 72>}, {transform_indices = @transform_4, window_bounds = array<i64: 1, 8, 256>}, {transform_indices = @transform_5, window_bounds = array<i64: 1, 8, 1>}, {transform_indices = @transform_6, window_bounds = array<i64: 1, 8, 1>}]} {
    %c0 = arith.constant 0 : index
    %c0_0 = arith.constant 0 : index
    %c0_1 = arith.constant 0 : index
    %0 = vector.load %arg1[%c0, %c0_0, %c0_1] : memref<1x8x256xf32, #tpu.memory_space<vmem>>, vector<1x8x256xf32>
    %1 = vector.shape_cast %0 : vector<1x8x256xf32> to vector<8x256xf32>
    %c0_2 = arith.constant 0 : index
    %c0_3 = arith.constant 0 : index
    %2 = vector.load %arg2[%c0_2, %c0_3] : memref<8x1xf32, #tpu.memory_space<vmem>>, vector<8x1xf32>
    %3 = vector.broadcast %2 : vector<8x1xf32> to vector<8x256xf32>
    %4 = arith.mulf %1, %3 : vector<8x256xf32>
    %c0_4 = arith.constant 0 : index
    %c0_5 = arith.constant 0 : index
    %5 = vector.load %arg3[%c0_4, %c0_5] : memref<8x1xf32, #tpu.memory_space<vmem>>, vector<8x1xf32>
    %6 = vector.broadcast %5 : vector<8x1xf32> to vector<8x256xf32>
    %7 = arith.addf %4, %6 : vector<8x256xf32>
    %cst = arith.constant 0.000000e+00 : f32
    %8 = vector.broadcast %cst : f32 to vector<8x256xf32>
    %9 = arith.maximumf %7, %8 : vector<8x256xf32>
    %10 = tpu.iota {dimensions = array<i32: 1>} : vector<1x256xi32>
    %c16_i32 = arith.constant 16 : i32
    %c0_i32 = arith.constant 0 : i32
    %11 = arith.cmpi eq, %c16_i32, %c0_i32 : i32
    %c1_i32 = arith.constant 1 : i32
    %12 = arith.select %11, %c1_i32, %c16_i32 : i32
    %13 = vector.broadcast %12 : i32 to vector<1x256xi32>
    %14 = arith.remsi %10, %13 : vector<1x256xi32>
    %c0_i32_6 = arith.constant 0 : i32
    %15 = vector.broadcast %c0_i32_6 : i32 to vector<1x256xi32>
    %16 = arith.cmpi ne, %14, %15 : vector<1x256xi32>
    %c0_i32_7 = arith.constant 0 : i32
    %17 = vector.broadcast %c0_i32_7 : i32 to vector<1x256xi32>
    %18 = arith.cmpi slt, %14, %17 : vector<1x256xi32>
    %c0_i32_8 = arith.constant 0 : i32
    %19 = arith.cmpi slt, %12, %c0_i32_8 : i32
    %20 = vector.broadcast %19 : i1 to vector<1x256xi1>
    %21 = vector.broadcast %20 : vector<1x256xi1> to vector<1x256xi1>
    %22 = arith.xori %18, %21 : vector<1x256xi1>
    %23 = arith.andi %22, %16 : vector<1x256xi1>
    %24 = vector.broadcast %12 : i32 to vector<1x256xi32>
    %25 = arith.addi %14, %24 : vector<1x256xi32>
    %26 = arith.select %23, %25, %14 : vector<1x256xi1>, vector<1x256xi32>
    %c0_9 = arith.constant 0 : index
    %c0_10 = arith.constant 0 : index
    %27 = vector.load %arg4[%c0_9, %c0_10] : memref<8x72xbf16, #tpu.memory_space<vmem>>, vector<8x72xbf16>
    %cst_11 = arith.constant 0.000000e+00 : f32
    %28 = vector.broadcast %cst_11 : f32 to vector<8x17xf32>
    %29 = tpu.concatenate %28, %9, %28 in 1 : vector<8x17xf32>, vector<8x256xf32>, vector<8x17xf32> -> vector<8x290xf32>
    %30 = vector.extract_strided_slice %29 {offsets = [0, 0], sizes = [8, 256], strides = [1, 1]} : vector<8x290xf32> to vector<8x256xf32>
    %c0_i32_12 = arith.constant 0 : i32
    %31 = vector.broadcast %c0_i32_12 : i32 to vector<1x256xi32>
    %32 = arith.cmpi eq, %26, %31 : vector<1x256xi32>
    %cst_13 = arith.constant 0.000000e+00 : f32
    %33 = vector.shape_cast %32 : vector<1x256xi1> to vector<1x256xi1>
    %34 = vector.broadcast %33 : vector<1x256xi1> to vector<8x256xi1>
    %35 = vector.broadcast %cst_13 : f32 to vector<8x256xf32>
    %36 = arith.select %34, %35, %30 : vector<8x256xi1>, vector<8x256xf32>
    %37 = vector.extract_strided_slice %29 {offsets = [0, 1], sizes = [8, 256], strides = [1, 1]} : vector<8x290xf32> to vector<8x256xf32>
    %38 = vector.extract_strided_slice %29 {offsets = [0, 2], sizes = [8, 256], strides = [1, 1]} : vector<8x290xf32> to vector<8x256xf32>
    %c15_i32 = arith.constant 15 : i32
    %39 = vector.broadcast %c15_i32 : i32 to vector<1x256xi32>
    %40 = arith.cmpi eq, %26, %39 : vector<1x256xi32>
    %cst_14 = arith.constant 0.000000e+00 : f32
    %41 = vector.shape_cast %40 : vector<1x256xi1> to vector<1x256xi1>
    %42 = vector.broadcast %41 : vector<1x256xi1> to vector<8x256xi1>
    %43 = vector.broadcast %cst_14 : f32 to vector<8x256xf32>
    %44 = arith.select %42, %43, %38 : vector<8x256xi1>, vector<8x256xf32>
    %45 = vector.extract_strided_slice %29 {offsets = [0, 16], sizes = [8, 256], strides = [1, 1]} : vector<8x290xf32> to vector<8x256xf32>
    %c0_i32_15 = arith.constant 0 : i32
    %46 = vector.broadcast %c0_i32_15 : i32 to vector<1x256xi32>
    %47 = arith.cmpi eq, %26, %46 : vector<1x256xi32>
    %cst_16 = arith.constant 0.000000e+00 : f32
    %48 = vector.shape_cast %47 : vector<1x256xi1> to vector<1x256xi1>
    %49 = vector.broadcast %48 : vector<1x256xi1> to vector<8x256xi1>
    %50 = vector.broadcast %cst_16 : f32 to vector<8x256xf32>
    %51 = arith.select %49, %50, %45 : vector<8x256xi1>, vector<8x256xf32>
    %52 = vector.extract_strided_slice %29 {offsets = [0, 17], sizes = [8, 256], strides = [1, 1]} : vector<8x290xf32> to vector<8x256xf32>
    %53 = vector.extract_strided_slice %29 {offsets = [0, 18], sizes = [8, 256], strides = [1, 1]} : vector<8x290xf32> to vector<8x256xf32>
    %c15_i32_17 = arith.constant 15 : i32
    %54 = vector.broadcast %c15_i32_17 : i32 to vector<1x256xi32>
    %55 = arith.cmpi eq, %26, %54 : vector<1x256xi32>
    %cst_18 = arith.constant 0.000000e+00 : f32
    %56 = vector.shape_cast %55 : vector<1x256xi1> to vector<1x256xi1>
    %57 = vector.broadcast %56 : vector<1x256xi1> to vector<8x256xi1>
    %58 = vector.broadcast %cst_18 : f32 to vector<8x256xf32>
    %59 = arith.select %57, %58, %53 : vector<8x256xi1>, vector<8x256xf32>
    %60 = vector.extract_strided_slice %29 {offsets = [0, 32], sizes = [8, 256], strides = [1, 1]} : vector<8x290xf32> to vector<8x256xf32>
    %c0_i32_19 = arith.constant 0 : i32
    %61 = vector.broadcast %c0_i32_19 : i32 to vector<1x256xi32>
    %62 = arith.cmpi eq, %26, %61 : vector<1x256xi32>
    %cst_20 = arith.constant 0.000000e+00 : f32
    %63 = vector.shape_cast %62 : vector<1x256xi1> to vector<1x256xi1>
    %64 = vector.broadcast %63 : vector<1x256xi1> to vector<8x256xi1>
    %65 = vector.broadcast %cst_20 : f32 to vector<8x256xf32>
    %66 = arith.select %64, %65, %60 : vector<8x256xi1>, vector<8x256xf32>
    %67 = vector.extract_strided_slice %29 {offsets = [0, 33], sizes = [8, 256], strides = [1, 1]} : vector<8x290xf32> to vector<8x256xf32>
    %68 = vector.extract_strided_slice %29 {offsets = [0, 34], sizes = [8, 256], strides = [1, 1]} : vector<8x290xf32> to vector<8x256xf32>
    %c15_i32_21 = arith.constant 15 : i32
    %69 = vector.broadcast %c15_i32_21 : i32 to vector<1x256xi32>
    %70 = arith.cmpi eq, %26, %69 : vector<1x256xi32>
    %cst_22 = arith.constant 0.000000e+00 : f32
    %71 = vector.shape_cast %70 : vector<1x256xi1> to vector<1x256xi1>
    %72 = vector.broadcast %71 : vector<1x256xi1> to vector<8x256xi1>
    %73 = vector.broadcast %cst_22 : f32 to vector<8x256xf32>
    %74 = arith.select %72, %73, %68 : vector<8x256xi1>, vector<8x256xf32>
    %75 = tpu.concatenate %36, %37, %44, %51, %52, %59, %66, %67, %74 in 0 : vector<8x256xf32>, vector<8x256xf32>, vector<8x256xf32>, vector<8x256xf32>, vector<8x256xf32>, vector<8x256xf32>, vector<8x256xf32>, vector<8x256xf32>, vector<8x256xf32> -> vector<72x256xf32>
    %76 = arith.truncf %75 : vector<72x256xf32> to vector<72x256xbf16>
    %cst_23 = arith.constant dense<0.000000e+00> : vector<8x256xf32>
    %77 = tpu.matmul %27, %76, %cst_23 {dimension_numbers = #tpu.dot_dimension_numbers<[1], [0], [0], [1], [0, 0, 1, 1], [], []>} : vector<8x72xbf16>, vector<72x256xbf16>, vector<8x256xf32> -> vector<8x256xf32>
    %c0_24 = arith.constant 0 : index
    %c0_25 = arith.constant 0 : index
    %c0_26 = arith.constant 0 : index
    %78 = vector.load %arg5[%c0_24, %c0_25, %c0_26] : memref<1x8x256xf32, #tpu.memory_space<vmem>>, vector<1x8x256xf32>
    %79 = vector.shape_cast %78 : vector<1x8x256xf32> to vector<8x256xf32>
    %80 = vector.shape_cast %77 : vector<8x256xf32> to vector<1x8x256xf32>
    tpu.vector_store %arg5[%c0_24, %c0_25, %c0_26], %80 {strides = array<i32>} : memref<1x8x256xf32, #tpu.memory_space<vmem>>, vector<1x8x256xf32>,
    %cst_27 = arith.constant dense<0.000000e+00> : vector<8xf32>
    %81 = vector.multi_reduction <add>, %77, %cst_27 [1] : vector<8x256xf32> to vector<8xf32>
    %82 = vector.shape_cast %81 : vector<8xf32> to vector<8x1xf32>
    %cst_28 = arith.constant 2.560000e+02 : f32
    %83 = vector.broadcast %cst_28 : f32 to vector<8x1xf32>
    %84 = arith.divf %82, %83 : vector<8x1xf32>
    %85 = vector.broadcast %84 : vector<8x1xf32> to vector<8x256xf32>
    %86 = arith.subf %77, %85 : vector<8x256xf32>
    %87 = arith.mulf %86, %86 : vector<8x256xf32>
    %cst_29 = arith.constant dense<0.000000e+00> : vector<8xf32>
    %88 = vector.multi_reduction <add>, %87, %cst_29 [1] : vector<8x256xf32> to vector<8xf32>
    %89 = vector.shape_cast %88 : vector<8xf32> to vector<8x1xf32>
    %c0_30 = arith.constant 0 : index
    %c0_31 = arith.constant 0 : index
    %c0_32 = arith.constant 0 : index
    %90 = vector.load %arg6[%c0_30, %c0_31, %c0_32] : memref<1x8x1xf32, #tpu.memory_space<vmem>>, vector<1x8x1xf32>
    %91 = vector.shape_cast %90 : vector<1x8x1xf32> to vector<8x1xf32>
    %92 = vector.shape_cast %84 : vector<8x1xf32> to vector<1x8x1xf32>
    tpu.vector_store %arg6[%c0_30, %c0_31, %c0_32], %92 {strides = array<i32>} : memref<1x8x1xf32, #tpu.memory_space<vmem>>, vector<1x8x1xf32>,
    %c0_33 = arith.constant 0 : index
    %c0_34 = arith.constant 0 : index
    %c0_35 = arith.constant 0 : index
    %93 = vector.load %arg7[%c0_33, %c0_34, %c0_35] : memref<1x8x1xf32, #tpu.memory_space<vmem>>, vector<1x8x1xf32>
    %94 = vector.shape_cast %93 : vector<1x8x1xf32> to vector<8x1xf32>
    %95 = vector.shape_cast %89 : vector<8x1xf32> to vector<1x8x1xf32>
    tpu.vector_store %arg7[%c0_33, %c0_34, %c0_35], %95 {strides = array<i32>} : memref<1x8x1xf32, #tpu.memory_space<vmem>>, vector<1x8x1xf32>,
    return
  }
  func.func @transform_0(%arg0: i32) -> (i32, i32, i32) {
    %c0_i32 = arith.constant 0 : i32
    %c0_i32_0 = arith.constant 0 : i32
    %c0_i32_1 = arith.constant 0 : i32
    return %arg0, %c0_i32, %c0_i32_0 : i32, i32, i32
  }
  func.func @transform_1(%arg0: i32) -> (i32, i32) {
    %c0_i32 = arith.constant 0 : i32
    %c0_i32_0 = arith.constant 0 : i32
    %c0_i32_1 = arith.constant 0 : i32
    return %c0_i32, %c0_i32_0 : i32, i32
  }
  func.func @transform_2(%arg0: i32) -> (i32, i32) {
    %c0_i32 = arith.constant 0 : i32
    %c0_i32_0 = arith.constant 0 : i32
    %c0_i32_1 = arith.constant 0 : i32
    return %c0_i32, %c0_i32_0 : i32, i32
  }
  func.func @transform_3(%arg0: i32) -> (i32, i32) {
    %c0_i32 = arith.constant 0 : i32
    %c0_i32_0 = arith.constant 0 : i32
    %c0_i32_1 = arith.constant 0 : i32
    return %c0_i32, %c0_i32_0 : i32, i32
  }
  func.func @transform_4(%arg0: i32) -> (i32, i32, i32) {
    %c0_i32 = arith.constant 0 : i32
    %c0_i32_0 = arith.constant 0 : i32
    %c0_i32_1 = arith.constant 0 : i32
    return %arg0, %c0_i32, %c0_i32_0 : i32, i32, i32
  }
  func.func @transform_5(%arg0: i32) -> (i32, i32, i32) {
    %c0_i32 = arith.constant 0 : i32
    %c0_i32_0 = arith.constant 0 : i32
    %c0_i32_1 = arith.constant 0 : i32
    return %arg0, %c0_i32, %c0_i32_0 : i32, i32, i32
  }
  func.func @transform_6(%arg0: i32) -> (i32, i32, i32) {
    %c0_i32 = arith.constant 0 : i32
    %c0_i32_0 = arith.constant 0 : i32
    %c0_i32_1 = arith.constant 0 : i32
    return %arg0, %c0_i32, %c0_i32_0 : i32, i32, i32
  }
}

module attributes {stable_mosaic.version = 11 : i64} {
  func.func @_bn_conv_res_kernel(%arg0: i32, %arg1: memref<1x8x256xf32, #tpu.memory_space<vmem>>, %arg2: memref<1x8x256xf32, #tpu.memory_space<vmem>>, %arg3: memref<8x1xf32, #tpu.memory_space<vmem>>, %arg4: memref<8x1xf32, #tpu.memory_space<vmem>>, %arg5: memref<8x72xbf16, #tpu.memory_space<vmem>>, %arg6: memref<1x8x256xf32, #tpu.memory_space<vmem>>) attributes {dimension_semantics = [#tpu.dimension_semantics<parallel>], iteration_bounds = array<i64: 2>, scalar_prefetch = 0 : i64, scratch_operands = 0 : i64, tpu.core_type = #tpu.core_type<tc>, window_params = [{transform_indices = @transform_0, window_bounds = array<i64: 1, 8, 256>}, {transform_indices = @transform_1, window_bounds = array<i64: 1, 8, 256>}, {pipeline_mode = #tpu.pipeline_mode<synchronous>, transform_indices = @transform_2, window_bounds = array<i64: 8, 1>}, {pipeline_mode = #tpu.pipeline_mode<synchronous>, transform_indices = @transform_3, window_bounds = array<i64: 8, 1>}, {pipeline_mode = #tpu.pipeline_mode<synchronous>, transform_indices = @transform_4, window_bounds = array<i64: 8, 72>}, {transform_indices = @transform_5, window_bounds = array<i64: 1, 8, 256>}]} {
    %c0 = arith.constant 0 : index
    %c0_0 = arith.constant 0 : index
    %c0_1 = arith.constant 0 : index
    %0 = vector.load %arg1[%c0, %c0_0, %c0_1] : memref<1x8x256xf32, #tpu.memory_space<vmem>>, vector<1x8x256xf32>
    %1 = vector.shape_cast %0 : vector<1x8x256xf32> to vector<8x256xf32>
    %c0_2 = arith.constant 0 : index
    %c0_3 = arith.constant 0 : index
    %2 = vector.load %arg3[%c0_2, %c0_3] : memref<8x1xf32, #tpu.memory_space<vmem>>, vector<8x1xf32>
    %3 = vector.broadcast %2 : vector<8x1xf32> to vector<8x256xf32>
    %4 = arith.mulf %1, %3 : vector<8x256xf32>
    %c0_4 = arith.constant 0 : index
    %c0_5 = arith.constant 0 : index
    %5 = vector.load %arg4[%c0_4, %c0_5] : memref<8x1xf32, #tpu.memory_space<vmem>>, vector<8x1xf32>
    %6 = vector.broadcast %5 : vector<8x1xf32> to vector<8x256xf32>
    %7 = arith.addf %4, %6 : vector<8x256xf32>
    %cst = arith.constant 0.000000e+00 : f32
    %8 = vector.broadcast %cst : f32 to vector<8x256xf32>
    %9 = arith.maximumf %7, %8 : vector<8x256xf32>
    %10 = tpu.iota {dimensions = array<i32: 1>} : vector<1x256xi32>
    %c16_i32 = arith.constant 16 : i32
    %c0_i32 = arith.constant 0 : i32
    %11 = arith.cmpi eq, %c16_i32, %c0_i32 : i32
    %c1_i32 = arith.constant 1 : i32
    %12 = arith.select %11, %c1_i32, %c16_i32 : i32
    %13 = vector.broadcast %12 : i32 to vector<1x256xi32>
    %14 = arith.remsi %10, %13 : vector<1x256xi32>
    %c0_i32_6 = arith.constant 0 : i32
    %15 = vector.broadcast %c0_i32_6 : i32 to vector<1x256xi32>
    %16 = arith.cmpi ne, %14, %15 : vector<1x256xi32>
    %c0_i32_7 = arith.constant 0 : i32
    %17 = vector.broadcast %c0_i32_7 : i32 to vector<1x256xi32>
    %18 = arith.cmpi slt, %14, %17 : vector<1x256xi32>
    %c0_i32_8 = arith.constant 0 : i32
    %19 = arith.cmpi slt, %12, %c0_i32_8 : i32
    %20 = vector.broadcast %19 : i1 to vector<1x256xi1>
    %21 = vector.broadcast %20 : vector<1x256xi1> to vector<1x256xi1>
    %22 = arith.xori %18, %21 : vector<1x256xi1>
    %23 = arith.andi %22, %16 : vector<1x256xi1>
    %24 = vector.broadcast %12 : i32 to vector<1x256xi32>
    %25 = arith.addi %14, %24 : vector<1x256xi32>
    %26 = arith.select %23, %25, %14 : vector<1x256xi1>, vector<1x256xi32>
    %c0_9 = arith.constant 0 : index
    %c0_10 = arith.constant 0 : index
    %27 = vector.load %arg5[%c0_9, %c0_10] : memref<8x72xbf16, #tpu.memory_space<vmem>>, vector<8x72xbf16>
    %cst_11 = arith.constant 0.000000e+00 : f32
    %28 = vector.broadcast %cst_11 : f32 to vector<8x17xf32>
    %29 = tpu.concatenate %28, %9, %28 in 1 : vector<8x17xf32>, vector<8x256xf32>, vector<8x17xf32> -> vector<8x290xf32>
    %30 = vector.extract_strided_slice %29 {offsets = [0, 0], sizes = [8, 256], strides = [1, 1]} : vector<8x290xf32> to vector<8x256xf32>
    %c0_i32_12 = arith.constant 0 : i32
    %31 = vector.broadcast %c0_i32_12 : i32 to vector<1x256xi32>
    %32 = arith.cmpi eq, %26, %31 : vector<1x256xi32>
    %cst_13 = arith.constant 0.000000e+00 : f32
    %33 = vector.shape_cast %32 : vector<1x256xi1> to vector<1x256xi1>
    %34 = vector.broadcast %33 : vector<1x256xi1> to vector<8x256xi1>
    %35 = vector.broadcast %cst_13 : f32 to vector<8x256xf32>
    %36 = arith.select %34, %35, %30 : vector<8x256xi1>, vector<8x256xf32>
    %37 = vector.extract_strided_slice %29 {offsets = [0, 1], sizes = [8, 256], strides = [1, 1]} : vector<8x290xf32> to vector<8x256xf32>
    %38 = vector.extract_strided_slice %29 {offsets = [0, 2], sizes = [8, 256], strides = [1, 1]} : vector<8x290xf32> to vector<8x256xf32>
    %c15_i32 = arith.constant 15 : i32
    %39 = vector.broadcast %c15_i32 : i32 to vector<1x256xi32>
    %40 = arith.cmpi eq, %26, %39 : vector<1x256xi32>
    %cst_14 = arith.constant 0.000000e+00 : f32
    %41 = vector.shape_cast %40 : vector<1x256xi1> to vector<1x256xi1>
    %42 = vector.broadcast %41 : vector<1x256xi1> to vector<8x256xi1>
    %43 = vector.broadcast %cst_14 : f32 to vector<8x256xf32>
    %44 = arith.select %42, %43, %38 : vector<8x256xi1>, vector<8x256xf32>
    %45 = vector.extract_strided_slice %29 {offsets = [0, 16], sizes = [8, 256], strides = [1, 1]} : vector<8x290xf32> to vector<8x256xf32>
    %c0_i32_15 = arith.constant 0 : i32
    %46 = vector.broadcast %c0_i32_15 : i32 to vector<1x256xi32>
    %47 = arith.cmpi eq, %26, %46 : vector<1x256xi32>
    %cst_16 = arith.constant 0.000000e+00 : f32
    %48 = vector.shape_cast %47 : vector<1x256xi1> to vector<1x256xi1>
    %49 = vector.broadcast %48 : vector<1x256xi1> to vector<8x256xi1>
    %50 = vector.broadcast %cst_16 : f32 to vector<8x256xf32>
    %51 = arith.select %49, %50, %45 : vector<8x256xi1>, vector<8x256xf32>
    %52 = vector.extract_strided_slice %29 {offsets = [0, 17], sizes = [8, 256], strides = [1, 1]} : vector<8x290xf32> to vector<8x256xf32>
    %53 = vector.extract_strided_slice %29 {offsets = [0, 18], sizes = [8, 256], strides = [1, 1]} : vector<8x290xf32> to vector<8x256xf32>
    %c15_i32_17 = arith.constant 15 : i32
    %54 = vector.broadcast %c15_i32_17 : i32 to vector<1x256xi32>
    %55 = arith.cmpi eq, %26, %54 : vector<1x256xi32>
    %cst_18 = arith.constant 0.000000e+00 : f32
    %56 = vector.shape_cast %55 : vector<1x256xi1> to vector<1x256xi1>
    %57 = vector.broadcast %56 : vector<1x256xi1> to vector<8x256xi1>
    %58 = vector.broadcast %cst_18 : f32 to vector<8x256xf32>
    %59 = arith.select %57, %58, %53 : vector<8x256xi1>, vector<8x256xf32>
    %60 = vector.extract_strided_slice %29 {offsets = [0, 32], sizes = [8, 256], strides = [1, 1]} : vector<8x290xf32> to vector<8x256xf32>
    %c0_i32_19 = arith.constant 0 : i32
    %61 = vector.broadcast %c0_i32_19 : i32 to vector<1x256xi32>
    %62 = arith.cmpi eq, %26, %61 : vector<1x256xi32>
    %cst_20 = arith.constant 0.000000e+00 : f32
    %63 = vector.shape_cast %62 : vector<1x256xi1> to vector<1x256xi1>
    %64 = vector.broadcast %63 : vector<1x256xi1> to vector<8x256xi1>
    %65 = vector.broadcast %cst_20 : f32 to vector<8x256xf32>
    %66 = arith.select %64, %65, %60 : vector<8x256xi1>, vector<8x256xf32>
    %67 = vector.extract_strided_slice %29 {offsets = [0, 33], sizes = [8, 256], strides = [1, 1]} : vector<8x290xf32> to vector<8x256xf32>
    %68 = vector.extract_strided_slice %29 {offsets = [0, 34], sizes = [8, 256], strides = [1, 1]} : vector<8x290xf32> to vector<8x256xf32>
    %c15_i32_21 = arith.constant 15 : i32
    %69 = vector.broadcast %c15_i32_21 : i32 to vector<1x256xi32>
    %70 = arith.cmpi eq, %26, %69 : vector<1x256xi32>
    %cst_22 = arith.constant 0.000000e+00 : f32
    %71 = vector.shape_cast %70 : vector<1x256xi1> to vector<1x256xi1>
    %72 = vector.broadcast %71 : vector<1x256xi1> to vector<8x256xi1>
    %73 = vector.broadcast %cst_22 : f32 to vector<8x256xf32>
    %74 = arith.select %72, %73, %68 : vector<8x256xi1>, vector<8x256xf32>
    %75 = tpu.concatenate %36, %37, %44, %51, %52, %59, %66, %67, %74 in 0 : vector<8x256xf32>, vector<8x256xf32>, vector<8x256xf32>, vector<8x256xf32>, vector<8x256xf32>, vector<8x256xf32>, vector<8x256xf32>, vector<8x256xf32>, vector<8x256xf32> -> vector<72x256xf32>
    %76 = arith.truncf %75 : vector<72x256xf32> to vector<72x256xbf16>
    %cst_23 = arith.constant dense<0.000000e+00> : vector<8x256xf32>
    %77 = tpu.matmul %27, %76, %cst_23 {dimension_numbers = #tpu.dot_dimension_numbers<[1], [0], [0], [1], [0, 0, 1, 1], [], []>} : vector<8x72xbf16>, vector<72x256xbf16>, vector<8x256xf32> -> vector<8x256xf32>
    %c0_24 = arith.constant 0 : index
    %c0_25 = arith.constant 0 : index
    %c0_26 = arith.constant 0 : index
    %78 = vector.load %arg2[%c0_24, %c0_25, %c0_26] : memref<1x8x256xf32, #tpu.memory_space<vmem>>, vector<1x8x256xf32>
    %79 = vector.shape_cast %78 : vector<1x8x256xf32> to vector<8x256xf32>
    %80 = arith.addf %77, %79 : vector<8x256xf32>
    %c0_27 = arith.constant 0 : index
    %c0_28 = arith.constant 0 : index
    %c0_29 = arith.constant 0 : index
    %81 = vector.load %arg6[%c0_27, %c0_28, %c0_29] : memref<1x8x256xf32, #tpu.memory_space<vmem>>, vector<1x8x256xf32>
    %82 = vector.shape_cast %81 : vector<1x8x256xf32> to vector<8x256xf32>
    %83 = vector.shape_cast %80 : vector<8x256xf32> to vector<1x8x256xf32>
    tpu.vector_store %arg6[%c0_27, %c0_28, %c0_29], %83 {strides = array<i32>} : memref<1x8x256xf32, #tpu.memory_space<vmem>>, vector<1x8x256xf32>,
    return
  }
  func.func @transform_0(%arg0: i32) -> (i32, i32, i32) {
    %c0_i32 = arith.constant 0 : i32
    %c0_i32_0 = arith.constant 0 : i32
    %c0_i32_1 = arith.constant 0 : i32
    return %arg0, %c0_i32, %c0_i32_0 : i32, i32, i32
  }
  func.func @transform_1(%arg0: i32) -> (i32, i32, i32) {
    %c0_i32 = arith.constant 0 : i32
    %c0_i32_0 = arith.constant 0 : i32
    %c0_i32_1 = arith.constant 0 : i32
    return %arg0, %c0_i32, %c0_i32_0 : i32, i32, i32
  }
  func.func @transform_2(%arg0: i32) -> (i32, i32) {
    %c0_i32 = arith.constant 0 : i32
    %c0_i32_0 = arith.constant 0 : i32
    %c0_i32_1 = arith.constant 0 : i32
    return %c0_i32, %c0_i32_0 : i32, i32
  }
  func.func @transform_3(%arg0: i32) -> (i32, i32) {
    %c0_i32 = arith.constant 0 : i32
    %c0_i32_0 = arith.constant 0 : i32
    %c0_i32_1 = arith.constant 0 : i32
    return %c0_i32, %c0_i32_0 : i32, i32
  }
  func.func @transform_4(%arg0: i32) -> (i32, i32) {
    %c0_i32 = arith.constant 0 : i32
    %c0_i32_0 = arith.constant 0 : i32
    %c0_i32_1 = arith.constant 0 : i32
    return %c0_i32, %c0_i32_0 : i32, i32
  }
  func.func @transform_5(%arg0: i32) -> (i32, i32, i32) {
    %c0_i32 = arith.constant 0 : i32
    %c0_i32_0 = arith.constant 0 : i32
    %c0_i32_1 = arith.constant 0 : i32
    return %arg0, %c0_i32, %c0_i32_0 : i32, i32, i32
  }
}

</mosaic_0001>

<llo_original>
// kernel: preact_basic_block.3
$region0: #{preact_basic_block.3}
  #allocation0 [shape = 'u32[]', space=smem, size = 0x4, offset = 0x4, fixed_abs, tag = 'smem constant byte address 0x4 - core index']
  #allocation1 [shape = 'u32[144,128]{1,0:T(1,128)}', space=vmem, size = 0x12000, scoped, tag = 'internal scratch']
  %s0 = inlined_call_operand.vmem [shape: f32[2,8,256], index: 0, kind: input, shape index: {}]
  %s1 = inlined_call_operand.vmem [shape: f32[2,8,1], index: 1, kind: output, shape index: {0}]
  %s2 = inlined_call_operand.vmem [shape: f32[2,8,1], index: 2, kind: output, shape index: {1}]
  %3 = xla_tuple %s1, %s2
  %s4 = sld [smem:[#allocation0]]
  $region45: #{preact_basic_block.3} parent=0
    _
  %s6 = ssub.s32 1, %s4
  %s7 = scalar_select 0, %s6, %s4
  loop: start=0, step=1, limit=4
  $region2: #{preact_basic_block.3} parent=0 // loop_pre_header
    _
  $region3: #{preact_basic_block.3} parent=0 // loop_header
    %s9 = sphi 0, %s13
    %p10 = scmp.ge.s32.totalorder %s9, 4
    %s19 = sphi 0, %s21
    %s22 = sphi 0, %s19
    %s23 = sphi 0, %s22
    %s39 = sphi 0, %s23
    %s45 = sphi 0, %s47
    %s48 = sphi 0, %s45
    %s49 = sphi 0, %s48
    %s65 = sphi 0, %s49
    %s71 = sphi 0, %s73
    %s74 = sphi 0, %s71
    %s75 = sphi 0, %s74
    %s91 = sphi 0, %s75
  $region4: #{preact_basic_block.3} parent=0 // loop_header_branch
    %12 = sbr.rel (%p10) target = $region8
  $region5: #{preact_basic_block.3} parent=0 // loop_body
    %s14 = ssub.s32 %s9, 1
    %s15 = ssub.s32 %s9, 2
    %s16 = sadd.s32 %s9, 1
    %s17 = ssub.s32 %s9, %s16
    %p18 = scmp.eq.s32.totalorder %s17, 0
    %s20 = sadd.s32 %s19, 1
    %s21 = scalar_select %p18, %s19, %s20
    %p24 = pneg %p18
    %p25 = scmp.eq.s32.totalorder %s9, 1
    %p26 = por %p24, %p25
    %p27 = scmp.ne.s32.totalorder %s19, %s22
    %p28 = scmp.eq.s32.totalorder %s9, 0
    %p29 = por %p27, %p28
    %p30 = scmp.ne.s32.totalorder %s19, %s22
    %p31 = scmp.eq.s32.totalorder %s14, 1
    %p32 = por %p30, %p31
    %p33 = scmp.ne.s32.totalorder %s22, %s23
    %p34 = scmp.eq.s32.totalorder %s14, 0
    %p35 = por %p33, %p34
    %p36 = scmp.ne.s32.totalorder %s22, %s23
    %p37 = scmp.eq.s32.totalorder %s15, 1
    %p38 = por %p36, %p37
    %p40 = scmp.ne.s32.totalorder %s23, %s39
    %p41 = scmp.eq.s32.totalorder %s15, 0
    %p42 = por %p40, %p41
    %s43 = ssub.s32 %s9, %s16
    %p44 = scmp.eq.s32.totalorder %s43, 0
    %s46 = sadd.s32 %s45, 1
    %s47 = scalar_select %p44, %s45, %s46
    %p50 = pneg %p44
    %p51 = scmp.eq.s32.totalorder %s9, 1
    %p52 = por %p50, %p51
    %p53 = scmp.ne.s32.totalorder %s45, %s48
    %p54 = scmp.eq.s32.totalorder %s9, 0
    %p55 = por %p53, %p54
    %p56 = scmp.ne.s32.totalorder %s45, %s48
    %p57 = scmp.eq.s32.totalorder %s14, 1
    %p58 = por %p56, %p57
    %p59 = scmp.ne.s32.totalorder %s48, %s49
    %p60 = scmp.eq.s32.totalorder %s14, 0
    %p61 = por %p59, %p60
    %p62 = scmp.ne.s32.totalorder %s48, %s49
    %p63 = scmp.eq.s32.totalorder %s15, 1
    %p64 = por %p62, %p63
    %p66 = scmp.ne.s32.totalorder %s49, %s65
    %p67 = scmp.eq.s32.totalorder %s15, 0
    %p68 = por %p66, %p67
    %s69 = ssub.s32 %s9, %s16
    %p70 = scmp.eq.s32.totalorder %s69, 0
    %s72 = sadd.s32 %s71, 1
    %s73 = scalar_select %p70, %s71, %s72
    %p76 = pneg %p70
    %p77 = scmp.eq.s32.totalorder %s9, 1
    %p78 = por %p76, %p77
    %p79 = scmp.ne.s32.totalorder %s71, %s74
    %p80 = scmp.eq.s32.totalorder %s9, 0
    %p81 = por %p79, %p80
    %p82 = scmp.ne.s32.totalorder %s71, %s74
    %p83 = scmp.eq.s32.totalorder %s14, 1
    %p84 = por %p82, %p83
    %p85 = scmp.ne.s32.totalorder %s74, %s75
    %p86 = scmp.eq.s32.totalorder %s14, 0
    %p87 = por %p85, %p86
    %p88 = scmp.ne.s32.totalorder %s74, %s75
    %p89 = scmp.eq.s32.totalorder %s15, 1
    %p90 = por %p88, %p89
    %p92 = scmp.ne.s32.totalorder %s75, %s91
    %p93 = scmp.eq.s32.totalorder %s15, 0
    %p94 = por %p92, %p93
    %p95 = scmp.le.s32.totalorder 1, %s9
    %p96 = scmp.lt.s32.totalorder %s9, 3
    %p97 = pnand %p95, %p96
    %p98 = pneg %p97
    // Predicated region
    $region9: #{preact_basic_block.3} parent=5 // pred_check
      _
    $region10: #{preact_basic_block.3} parent=5 // pred_check_branch
      %100 = sbr.rel (%p97) target = $region12
    $region11: #{preact_basic_block.3} parent=5 // pred_region
      %s101 = ssub.s32 %s9, 1
    $region12: #{preact_basic_block.3} parent=5 // pred_fallthru
      _
    %p102 = scmp.lt.s32.totalorder %s9, 2
    // Predicated region
    $region13: #{preact_basic_block.3} parent=5 // pred_check
      %p103 = pneg %p102
    $region14: #{preact_basic_block.3} parent=5 // pred_check_branch
      %105 = sbr.rel (%p103) target = $region16
    $region15: #{preact_basic_block.3} parent=5 // pred_region
      // Predicated region
      $region17: #{preact_basic_block.3} parent=15 // pred_check
        %p106 = pneg %p29
      $region18: #{preact_basic_block.3} parent=15 // pred_check_branch
        %108 = sbr.rel (%p106) target = $region20
      $region19: #{preact_basic_block.3} parent=15 // pred_region
        %p109 = scmp.lt.s32.totalorder %s9, 1
        %s110 = scalar_select %p109, %s9, 1
        %s111 = smul.addr %s110, 2
        %s112 = smul.addr %s111, 8
        %s113 = scalar_lea.vmem %s0, %s112
      $region20: #{preact_basic_block.3} parent=15 // pred_fallthru
        _
    $region16: #{preact_basic_block.3} parent=5 // pred_fallthru
      _
    %p114 = scmp.le.s32.totalorder 1, %s9
    %p115 = scmp.lt.s32.totalorder %s9, 3
    %p116 = pnand %p114, %p115
    %p117 = pneg %p116
    // Predicated region
    $region21: #{preact_basic_block.3} parent=5 // pred_check
      _
    $region22: #{preact_basic_block.3} parent=5 // pred_check_branch
      %119 = sbr.rel (%p116) target = $region24
    $region23: #{preact_basic_block.3} parent=5 // pred_region
      %s120 = ssub.s32 %s9, 1
      %p121 = scmp.lt.s32.totalorder %s14, 1
      %s122 = scalar_select %p121, %s14, 1
      %s123 = smul.addr %s122, 2
      %s124 = smul.addr %s123, 8
      %s125 = scalar_lea.vmem %s0, %s124
      %p126 = pneg %p35
      %p127 = pneg %p32
      %p128 = pneg %p61
      %p129 = pneg %p58
      %p130 = scmp.lt.s32.totalorder %s14, 1
      %s131 = scalar_select %p130, %s14, 1
      %s132 = smul.addr %s131, 8
      %s133 = scalar_lea.vmem %s1, %s132
      %p134 = pneg %p87
      %p135 = pneg %p84
      %p136 = scmp.lt.s32.totalorder %s14, 1
      %s137 = scalar_select %p136, %s14, 1
      %s138 = smul.addr %s137, 8
      %s139 = scalar_lea.vmem %s2, %s138
      %p140 = scmp.lt.s32.totalorder %s14, 1
      %s141 = scalar_select %p140, %s14, 1
      %s142 = smul.addr %s141, 2
      %s143 = smul.addr %s142, 8
      %s144 = scalar_lea.vmem %s0, %s143
      %p145 = scmp.lt.s32.totalorder %s14, 1
      %s146 = scalar_select %p145, %s14, 1
      %s147 = smul.addr %s146, 8
      %s148 = scalar_lea.vmem %s1, %s147
      %p149 = scmp.lt.s32.totalorder %s14, 1
      %s150 = scalar_select %p149, %s14, 1
      %s151 = smul.addr %s150, 8
      %s152 = scalar_lea.vmem %s2, %s151
      %v153 = vld [vmem:[%s144] sm:$0xff]
      %v154 = vld [vmem:[%s144 + $0x8] sm:$0xff]
      %v155 = vadd.f32 %v153, %v154
      %156 = vadd.xlane.f32.xlu0 %v155
      %v157 = vpop.xlane.xlu0 %156
      %v158 = vrcp.pop 256.0
      %v159 = vmul.f32 %v157, %v158
      %v160 = vsub.f32 %v153, %v159
      %v161 = vsub.f32 %v154, %v159
      %v162 = vmul.f32 %v160, %v160
      %v163 = vmul.f32 %v161, %v161
      %v164 = vadd.f32 %v162, %v163
      %165 = vadd.xlane.f32.xlu0 %v164
      %v166 = vpop.xlane.xlu0 %165
      %vm167 = vcmask 7168
      %168 = vst.msk [vmem:[%s148] sm:$0xff] %vm167, %v159
      %169 = vst.msk [vmem:[%s152] sm:$0xff] %vm167, %v166
      %p170 = scmp.lt.s32.totalorder %s14, 1
      %s171 = scalar_select %p170, %s14, 1
      %s172 = smul.addr %s171, 8
      %s173 = scalar_lea.vmem %s1, %s172
      %p174 = scmp.lt.s32.totalorder %s14, 1
      %s175 = scalar_select %p174, %s14, 1
      %s176 = smul.addr %s175, 8
      %s177 = scalar_lea.vmem %s2, %s176
      // Predicated region
      $region25: #{preact_basic_block.3} parent=23 // pred_check
        %p178 = pneg %p58
      $region26: #{preact_basic_block.3} parent=23 // pred_check_branch
        %180 = sbr.rel (%p178) target = $region28
      $region27: #{preact_basic_block.3} parent=23 // pred_region
        _
      $region28: #{preact_basic_block.3} parent=23 // pred_fallthru
        _
      // Predicated region
      $region29: #{preact_basic_block.3} parent=23 // pred_check
        %p181 = pneg %p84
      $region30: #{preact_basic_block.3} parent=23 // pred_check_branch
        %183 = sbr.rel (%p181) target = $region32
      $region31: #{preact_basic_block.3} parent=23 // pred_region
        _
      $region32: #{preact_basic_block.3} parent=23 // pred_fallthru
        _
    $region24: #{preact_basic_block.3} parent=5 // pred_fallthru
      _
    %p184 = scmp.le.s32.totalorder 2, %s9
    // Predicated region
    $region33: #{preact_basic_block.3} parent=5 // pred_check
      %p185 = pneg %p184
    $region34: #{preact_basic_block.3} parent=5 // pred_check_branch
      %187 = sbr.rel (%p185) target = $region36
    $region35: #{preact_basic_block.3} parent=5 // pred_region
      %s188 = ssub.s32 %s9, 2
      // Predicated region
      $region37: #{preact_basic_block.3} parent=35 // pred_check
        %p189 = pneg %p64
      $region38: #{preact_basic_block.3} parent=35 // pred_check_branch
        %191 = sbr.rel (%p189) target = $region40
      $region39: #{preact_basic_block.3} parent=35 // pred_region
        %p192 = scmp.lt.s32.totalorder %s15, 1
        %s193 = scalar_select %p192, %s15, 1
        %s194 = smul.addr %s193, 8
        %s195 = scalar_lea.vmem %s1, %s194
      $region40: #{preact_basic_block.3} parent=35 // pred_fallthru
        _
      // Predicated region
      $region41: #{preact_basic_block.3} parent=35 // pred_check
        %p196 = pneg %p90
      $region42: #{preact_basic_block.3} parent=35 // pred_check_branch
        %198 = sbr.rel (%p196) target = $region44
      $region43: #{preact_basic_block.3} parent=35 // pred_region
        %p199 = scmp.lt.s32.totalorder %s15, 1
        %s200 = scalar_select %p199, %s15, 1
        %s201 = smul.addr %s200, 8
        %s202 = scalar_lea.vmem %s2, %s201
      $region44: #{preact_basic_block.3} parent=35 // pred_fallthru
        _
    $region36: #{preact_basic_block.3} parent=5 // pred_fallthru
      _
  $region6: #{preact_basic_block.3} parent=0 // loop_footer
    %s13 = sadd.s32 1, %s9
  $region7: #{preact_basic_block.3} parent=0 // loop_footer_branch
    %8 = sbr.rel target = $region3
  $region8: #{preact_basic_block.3} parent=0 // loop_exit
    _

// kernel: preact_basic_block.4
$region0: #{preact_basic_block.4}
  #allocation0 [shape = 'u32[]', space=smem, size = 0x4, offset = 0x4, fixed_abs, tag = 'smem constant byte address 0x4 - core index']
  #allocation1 [shape = 'u32[144,128]{1,0:T(1,128)}', space=vmem, size = 0x12000, scoped, tag = 'internal scratch']
  %s0 = inlined_call_operand.vmem [shape: f32[2,8,256], index: 0, kind: input, shape index: {}]
  %s1 = inlined_call_operand.vmem [shape: f32[8,1], index: 1, kind: input, shape index: {}]
  %s2 = inlined_call_operand.vmem [shape: f32[8,1], index: 2, kind: input, shape index: {}]
  %s3 = inlined_call_operand.vmem [shape: bf16[8,72], index: 3, kind: input, shape index: {}]
  %s4 = inlined_call_operand.vmem [shape: f32[2,8,256], index: 4, kind: output, shape index: {0}]
  %s5 = inlined_call_operand.vmem [shape: f32[2,8,1], index: 5, kind: output, shape index: {1}]
  %s6 = inlined_call_operand.vmem [shape: f32[2,8,1], index: 6, kind: output, shape index: {2}]
  %7 = xla_tuple %s4, %s5, %s6
  %s8 = sld [smem:[#allocation0]]
  $region65: #{preact_basic_block.4} parent=0
    _
  %s10 = ssub.s32 1, %s8
  %s11 = scalar_select 0, %s10, %s8
  loop: start=0, step=1, limit=4
  $region2: #{preact_basic_block.4} parent=0 // loop_pre_header
    _
  $region3: #{preact_basic_block.4} parent=0 // loop_header
    %s13 = sphi 0, %s17
    %p14 = scmp.ge.s32.totalorder %s13, 4
    %s23 = sphi 0, %s25
    %s26 = sphi 0, %s23
    %s27 = sphi 0, %s26
    %s43 = sphi 0, %s27
    %s47 = sphi 0, %s47
    %s49 = sphi 0, %s47
    %s50 = sphi 0, %s49
    %s64 = sphi 0, %s50
    %s68 = sphi 0, %s68
    %s70 = sphi 0, %s68
    %s71 = sphi 0, %s70
    %s85 = sphi 0, %s71
    %s89 = sphi 0, %s89
    %s91 = sphi 0, %s89
    %s92 = sphi 0, %s91
    %s106 = sphi 0, %s92
    %s112 = sphi 0, %s114
    %s115 = sphi 0, %s112
    %s116 = sphi 0, %s115
    %s132 = sphi 0, %s116
    %s138 = sphi 0, %s140
    %s141 = sphi 0, %s138
    %s142 = sphi 0, %s141
    %s158 = sphi 0, %s142
    %s164 = sphi 0, %s166
    %s167 = sphi 0, %s164
    %s168 = sphi 0, %s167
    %s184 = sphi 0, %s168
  $region4: #{preact_basic_block.4} parent=0 // loop_header_branch
    %16 = sbr.rel (%p14) target = $region8
  $region5: #{preact_basic_block.4} parent=0 // loop_body
    %s18 = ssub.s32 %s13, 1
    %s19 = ssub.s32 %s13, 2
    %s20 = sadd.s32 %s13, 1
    %s21 = ssub.s32 %s13, %s20
    %p22 = scmp.eq.s32.totalorder %s21, 0
    %s24 = sadd.s32 %s23, 1
    %s25 = scalar_select %p22, %s23, %s24
    %p28 = pneg %p22
    %p29 = scmp.eq.s32.totalorder %s13, 1
    %p30 = por %p28, %p29
    %p31 = scmp.ne.s32.totalorder %s23, %s26
    %p32 = scmp.eq.s32.totalorder %s13, 0
    %p33 = por %p31, %p32
    %p34 = scmp.ne.s32.totalorder %s23, %s26
    %p35 = scmp.eq.s32.totalorder %s18, 1
    %p36 = por %p34, %p35
    %p37 = scmp.ne.s32.totalorder %s26, %s27
    %p38 = scmp.eq.s32.totalorder %s18, 0
    %p39 = por %p37, %p38
    %p40 = scmp.ne.s32.totalorder %s26, %s27
    %p41 = scmp.eq.s32.totalorder %s19, 1
    %p42 = por %p40, %p41
    %p44 = scmp.ne.s32.totalorder %s27, %s43
    %p45 = scmp.eq.s32.totalorder %s19, 0
    %p46 = por %p44, %p45
    %s48 = sadd.s32 %s47, 1
    %p51 = scmp.eq.s32.totalorder %s13, 1
    %p52 = scmp.ne.s32.totalorder %s47, %s49
    %p53 = scmp.eq.s32.totalorder %s13, 0
    %p54 = por %p52, %p53
    %p55 = scmp.ne.s32.totalorder %s47, %s49
    %p56 = scmp.eq.s32.totalorder %s18, 1
    %p57 = por %p55, %p56
    %p58 = scmp.ne.s32.totalorder %s49, %s50
    %p59 = scmp.eq.s32.totalorder %s18, 0
    %p60 = por %p58, %p59
    %p61 = scmp.ne.s32.totalorder %s49, %s50
    %p62 = scmp.eq.s32.totalorder %s19, 1
    %p63 = por %p61, %p62
    %p65 = scmp.ne.s32.totalorder %s50, %s64
    %p66 = scmp.eq.s32.totalorder %s19, 0
    %p67 = por %p65, %p66
    %s69 = sadd.s32 %s68, 1
    %p72 = scmp.eq.s32.totalorder %s13, 1
    %p73 = scmp.ne.s32.totalorder %s68, %s70
    %p74 = scmp.eq.s32.totalorder %s13, 0
    %p75 = por %p73, %p74
    %p76 = scmp.ne.s32.totalorder %s68, %s70
    %p77 = scmp.eq.s32.totalorder %s18, 1
    %p78 = por %p76, %p77
    %p79 = scmp.ne.s32.totalorder %s70, %s71
    %p80 = scmp.eq.s32.totalorder %s18, 0
    %p81 = por %p79, %p80
    %p82 = scmp.ne.s32.totalorder %s70, %s71
    %p83 = scmp.eq.s32.totalorder %s19, 1
    %p84 = por %p82, %p83
    %p86 = scmp.ne.s32.totalorder %s71, %s85
    %p87 = scmp.eq.s32.totalorder %s19, 0
    %p88 = por %p86, %p87
    %s90 = sadd.s32 %s89, 1
    %p93 = scmp.eq.s32.totalorder %s13, 1
    %p94 = scmp.ne.s32.totalorder %s89, %s91
    %p95 = scmp.eq.s32.totalorder %s13, 0
    %p96 = por %p94, %p95
    %p97 = scmp.ne.s32.totalorder %s89, %s91
    %p98 = scmp.eq.s32.totalorder %s18, 1
    %p99 = por %p97, %p98
    %p100 = scmp.ne.s32.totalorder %s91, %s92
    %p101 = scmp.eq.s32.totalorder %s18, 0
    %p102 = por %p100, %p101
    %p103 = scmp.ne.s32.totalorder %s91, %s92
    %p104 = scmp.eq.s32.totalorder %s19, 1
    %p105 = por %p103, %p104
    %p107 = scmp.ne.s32.totalorder %s92, %s106
    %p108 = scmp.eq.s32.totalorder %s19, 0
    %p109 = por %p107, %p108
    %s110 = ssub.s32 %s13, %s20
    %p111 = scmp.eq.s32.totalorder %s110, 0
    %s113 = sadd.s32 %s112, 1
    %s114 = scalar_select %p111, %s112, %s113
    %p117 = pneg %p111
    %p118 = scmp.eq.s32.totalorder %s13, 1
    %p119 = por %p117, %p118
    %p120 = scmp.ne.s32.totalorder %s112, %s115
    %p121 = scmp.eq.s32.totalorder %s13, 0
    %p122 = por %p120, %p121
    %p123 = scmp.ne.s32.totalorder %s112, %s115
    %p124 = scmp.eq.s32.totalorder %s18, 1
    %p125 = por %p123, %p124
    %p126 = scmp.ne.s32.totalorder %s115, %s116
    %p127 = scmp.eq.s32.totalorder %s18, 0
    %p128 = por %p126, %p127
    %p129 = scmp.ne.s32.totalorder %s115, %s116
    %p130 = scmp.eq.s32.totalorder %s19, 1
    %p131 = por %p129, %p130
    %p133 = scmp.ne.s32.totalorder %s116, %s132
    %p134 = scmp.eq.s32.totalorder %s19, 0
    %p135 = por %p133, %p134
    %s136 = ssub.s32 %s13, %s20
    %p137 = scmp.eq.s32.totalorder %s136, 0
    %s139 = sadd.s32 %s138, 1
    %s140 = scalar_select %p137, %s138, %s139
    %p143 = pneg %p137
    %p144 = scmp.eq.s32.totalorder %s13, 1
    %p145 = por %p143, %p144
    %p146 = scmp.ne.s32.totalorder %s138, %s141
    %p147 = scmp.eq.s32.totalorder %s13, 0
    %p148 = por %p146, %p147
    %p149 = scmp.ne.s32.totalorder %s138, %s141
    %p150 = scmp.eq.s32.totalorder %s18, 1
    %p151 = por %p149, %p150
    %p152 = scmp.ne.s32.totalorder %s141, %s142
    %p153 = scmp.eq.s32.totalorder %s18, 0
    %p154 = por %p152, %p153
    %p155 = scmp.ne.s32.totalorder %s141, %s142
    %p156 = scmp.eq.s32.totalorder %s19, 1
    %p157 = por %p155, %p156
    %p159 = scmp.ne.s32.totalorder %s142, %s158
    %p160 = scmp.eq.s32.totalorder %s19, 0
    %p161 = por %p159, %p160
    %s162 = ssub.s32 %s13, %s20
    %p163 = scmp.eq.s32.totalorder %s162, 0
    %s165 = sadd.s32 %s164, 1
    %s166 = scalar_select %p163, %s164, %s165
    %p169 = pneg %p163
    %p170 = scmp.eq.s32.totalorder %s13, 1
    %p171 = por %p169, %p170
    %p172 = scmp.ne.s32.totalorder %s164, %s167
    %p173 = scmp.eq.s32.totalorder %s13, 0
    %p174 = por %p172, %p173
    %p175 = scmp.ne.s32.totalorder %s164, %s167
    %p176 = scmp.eq.s32.totalorder %s18, 1
    %p177 = por %p175, %p176
    %p178 = scmp.ne.s32.totalorder %s167, %s168
    %p179 = scmp.eq.s32.totalorder %s18, 0
    %p180 = por %p178, %p179
    %p181 = scmp.ne.s32.totalorder %s167, %s168
    %p182 = scmp.eq.s32.totalorder %s19, 1
    %p183 = por %p181, %p182
    %p185 = scmp.ne.s32.totalorder %s168, %s184
    %p186 = scmp.eq.s32.totalorder %s19, 0
    %p187 = por %p185, %p186
    %p188 = scmp.le.s32.totalorder 1, %s13
    %p189 = scmp.lt.s32.totalorder %s13, 3
    %p190 = pnand %p188, %p189
    %p191 = pneg %p190
    // Predicated region
    $region9: #{preact_basic_block.4} parent=5 // pred_check
      _
    $region10: #{preact_basic_block.4} parent=5 // pred_check_branch
      %193 = sbr.rel (%p190) target = $region12
    $region11: #{preact_basic_block.4} parent=5 // pred_region
      %s194 = ssub.s32 %s13, 1
      // Predicated region
      $region13: #{preact_basic_block.4} parent=11 // pred_check
        %p195 = pneg %p60
      $region14: #{preact_basic_block.4} parent=11 // pred_check_branch
        %197 = sbr.rel (%p195) target = $region16
      $region15: #{preact_basic_block.4} parent=11 // pred_region
        _
      $region16: #{preact_basic_block.4} parent=11 // pred_fallthru
        _
      // Predicated region
      $region17: #{preact_basic_block.4} parent=11 // pred_check
        %p198 = pneg %p81
      $region18: #{preact_basic_block.4} parent=11 // pred_check_branch
        %200 = sbr.rel (%p198) target = $region20
      $region19: #{preact_basic_block.4} parent=11 // pred_region
        _
      $region20: #{preact_basic_block.4} parent=11 // pred_fallthru
        _
      // Predicated region
      $region21: #{preact_basic_block.4} parent=11 // pred_check
        %p201 = pneg %p102
      $region22: #{preact_basic_block.4} parent=11 // pred_check_branch
        %203 = sbr.rel (%p201) target = $region24
      $region23: #{preact_basic_block.4} parent=11 // pred_region
        _
      $region24: #{preact_basic_block.4} parent=11 // pred_fallthru
        _
    $region12: #{preact_basic_block.4} parent=5 // pred_fallthru
      _
    %p204 = scmp.lt.s32.totalorder %s13, 2
    // Predicated region
    $region25: #{preact_basic_block.4} parent=5 // pred_check
      %p205 = pneg %p204
    $region26: #{preact_basic_block.4} parent=5 // pred_check_branch
      %207 = sbr.rel (%p205) target = $region28
    $region27: #{preact_basic_block.4} parent=5 // pred_region
      // Predicated region
      $region29: #{preact_basic_block.4} parent=27 // pred_check
        %p208 = pneg %p33
      $region30: #{preact_basic_block.4} parent=27 // pred_check_branch
        %210 = sbr.rel (%p208) target = $region32
      $region31: #{preact_basic_block.4} parent=27 // pred_region
        %p211 = scmp.lt.s32.totalorder %s13, 1
        %s212 = scalar_select %p211, %s13, 1
        %s213 = smul.addr %s212, 2
        %s214 = smul.addr %s213, 8
        %s215 = scalar_lea.vmem %s0, %s214
      $region32: #{preact_basic_block.4} parent=27 // pred_fallthru
        _
    $region28: #{preact_basic_block.4} parent=5 // pred_fallthru
      _
    %p216 = scmp.le.s32.totalorder 1, %s13
    %p217 = scmp.lt.s32.totalorder %s13, 3
    %p218 = pnand %p216, %p217
    %p219 = pneg %p218
    // Predicated region
    $region33: #{preact_basic_block.4} parent=5 // pred_check
      _
    $region34: #{preact_basic_block.4} parent=5 // pred_check_branch
      %221 = sbr.rel (%p218) target = $region36
    $region35: #{preact_basic_block.4} parent=5 // pred_region
      %s222 = ssub.s32 %s13, 1
      %p223 = scmp.lt.s32.totalorder %s18, 1
      %s224 = scalar_select %p223, %s18, 1
      %s225 = smul.addr %s224, 2
      %s226 = smul.addr %s225, 8
      %s227 = scalar_lea.vmem %s0, %s226
      %p228 = pneg %p39
      %p229 = pneg %p36
      %p230 = pneg %p60
      %p231 = pneg %p57
      %p232 = pneg %p81
      %p233 = pneg %p78
      %p234 = pneg %p102
      %p235 = pneg %p99
      %p236 = pneg %p128
      %p237 = pneg %p125
      %p238 = scmp.lt.s32.totalorder %s18, 1
      %s239 = scalar_select %p238, %s18, 1
      %s240 = smul.addr %s239, 2
      %s241 = smul.addr %s240, 8
      %s242 = scalar_lea.vmem %s4, %s241
      %p243 = pneg %p154
      %p244 = pneg %p151
      %p245 = scmp.lt.s32.totalorder %s18, 1
      %s246 = scalar_select %p245, %s18, 1
      %s247 = smul.addr %s246, 8
      %s248 = scalar_lea.vmem %s5, %s247
      %p249 = pneg %p180
      %p250 = pneg %p177
      %p251 = scmp.lt.s32.totalorder %s18, 1
      %s252 = scalar_select %p251, %s18, 1
      %s253 = smul.addr %s252, 8
      %s254 = scalar_lea.vmem %s6, %s253
      %p255 = scmp.lt.s32.totalorder %s18, 1
      %s256 = scalar_select %p255, %s18, 1
      %s257 = smul.addr %s256, 2
      %s258 = smul.addr %s257, 8
      %s259 = scalar_lea.vmem %s0, %s258
      %p260 = scmp.lt.s32.totalorder %s18, 1
      %s261 = scalar_select %p260, %s18, 1
      %s262 = smul.addr %s261, 2
      %s263 = smul.addr %s262, 8
      %s264 = scalar_lea.vmem %s4, %s263
      %p265 = scmp.lt.s32.totalorder %s18, 1
      %s266 = scalar_select %p265, %s18, 1
      %s267 = smul.addr %s266, 8
      %s268 = scalar_lea.vmem %s5, %s267
      %p269 = scmp.lt.s32.totalorder %s18, 1
      %s270 = scalar_select %p269, %s18, 1
      %s271 = smul.addr %s270, 8
      %s272 = scalar_lea.vmem %s6, %s271
      %v274 = vld [vmem:[%s259] sm:$0xff]
      %v275 = vld [vmem:[%s259 + $0x8] sm:$0xff]
      %v276 = vld [vmem:[%s1] sm:$0xff]
      %278 = vset.pattern.permute.xlu0 0
      %279 = vperm.xlu0 %278, %v276
      %v280 = vpop.permute.xlu0 %279
      %v282 = vmul.f32 %v274, %v280
      %v283 = vmul.f32 %v275, %v280
      %v284 = vld [vmem:[%s2] sm:$0xff]
      %286 = vset.pattern.permute.xlu0 0
      %287 = vperm.xlu0 %286, %v284
      %v288 = vpop.permute.xlu0 %287
      %v290 = vadd.f32 %v282, %v288
      %v291 = vadd.f32 %v283, %v288
      %v292 = vmax.f32 %v290, 0.0
      %v293 = vmax.f32 %v291, 0.0
      %v294 = vlaneseq
      %v295 = vand.u32 %v294, 127
      %v296 = vadd.s32 %v295, 128
      %vm297 = vcmp.lt.s32.totalorder %v295, 0
      %v298 = vsub.s32 0, %v295
      %v299 = vsel %vm297, %v298, %v295
      %v300 = vshrl.u32 %v299, 4
      %v301 = vand.u32 %v299, 15
      %v302 = vsub.s32 0, %v301
      %v303 = vsel %vm297, %v302, %v301
      %vm304 = vcmp.lt.s32.totalorder %v296, 0
      %v305 = vsub.s32 0, %v296
      %v306 = vsel %vm304, %v305, %v296
      %v307 = vshrl.u32 %v306, 4
      %v308 = vand.u32 %v306, 15
      %v309 = vsub.s32 0, %v308
      %v310 = vsel %vm304, %v309, %v308
      %vm311 = vcmp.ne.s32.totalorder %v303, 0
      %vm312 = vcmp.ne.s32.totalorder %v310, 0
      %vm313 = vcmp.lt.s32.totalorder %v303, 0
      %vm314 = vcmp.lt.s32.totalorder %v310, 0
      %vm315 = vmand %vm313, %vm311
      %vm316 = vmand %vm314, %vm312
      %v317 = vadd.s32 %v303, 16
      %v318 = vadd.s32 %v310, 16
      %v319 = vsel %vm315, %v317, %v303
      %v320 = vsel %vm316, %v318, %v310
      %v321 = vld [vmem:[%s3] sm:$0xf]
      %324 = vrot.lane.b32.xlu0 %v292, 17
      %v325 = vpop.permute.xlu0 %324
      %326 = vrot.lane.b32.xlu0 %v293, 17
      %v327 = vpop.permute.xlu0 %326
      %vm328 = vcmask 138240
      %v329 = vsel %vm328, %v325, %v327
      %v333 = vsel %vm328, 0.0, %v325
      %v334 = vsel %vm328, %v327, 0.0
      %vm335 = vcmp.eq.s32.totalorder %v319, 0
      %vm336 = vcmp.eq.s32.totalorder %v320, 0
      %v337 = vsel %vm335, 1, 0
      %v338 = vsel %vm336, 1, 0
      %vm339 = vcmp.eq.s32.totalorder %v337, 1
      %vm340 = vcmp.eq.s32.totalorder %v338, 1
      %v341 = vsel %vm339, 0.0, %v333
      %v342 = vsel %vm340, 0.0, %v329
      %vm343 = vcmp.eq.s32.totalorder %v319, 15
      %vm344 = vcmp.eq.s32.totalorder %v320, 15
      %v345 = vsel %vm343, 1, 0
      %v346 = vsel %vm344, 1, 0
      %vm347 = vcmp.eq.s32.totalorder %v345, 1
      %vm348 = vcmp.eq.s32.totalorder %v346, 1
      %351 = vrot.lane.b32.xlu0 %v333, 126
      %v352 = vpop.permute.xlu0 %351
      %353 = vrot.lane.b32.xlu0 %v329, 126
      %v354 = vpop.permute.xlu0 %353
      %355 = vrot.lane.b32.xlu0 %v334, 126
      %v356 = vpop.permute.xlu0 %355
      %vm357 = vcmask 1031168
      %v358 = vsel %vm357, %v352, %v354
      %v359 = vsel %vm357, %v354, %v356
      %v362 = vsel %vm347, 0.0, %v358
      %v363 = vsel %vm348, 0.0, %v359
      %364 = vrot.lane.b32.xlu0 %v333, 112
      %v365 = vpop.permute.xlu0 %364
      %366 = vrot.lane.b32.xlu0 %v329, 112
      %v367 = vpop.permute.xlu0 %366
      %368 = vrot.lane.b32.xlu0 %v334, 112
      %v369 = vpop.permute.xlu0 %368
      %vm370 = vcmask 916480
      %v371 = vsel %vm370, %v365, %v367
      %v372 = vsel %vm370, %v367, %v369
      %v375 = vsel %vm339, 0.0, %v371
      %v376 = vsel %vm340, 0.0, %v372
      %377 = vrot.lane.b32.xlu0 %v333, 110
      %v378 = vpop.permute.xlu0 %377
      %379 = vrot.lane.b32.xlu0 %v329, 110
      %v380 = vpop.permute.xlu0 %379
      %381 = vrot.lane.b32.xlu0 %v334, 110
      %v382 = vpop.permute.xlu0 %381
      %vm383 = vcmask 900096
      %v384 = vsel %vm383, %v378, %v380
      %v385 = vsel %vm383, %v380, %v382
      %v388 = vsel %vm347, 0.0, %v384
      %v389 = vsel %vm348, 0.0, %v385
      %390 = vrot.lane.b32.xlu0 %v333, 96
      %v391 = vpop.permute.xlu0 %390
      %392 = vrot.lane.b32.xlu0 %v329, 96
      %v393 = vpop.permute.xlu0 %392
      %394 = vrot.lane.b32.xlu0 %v334, 96
      %v395 = vpop.permute.xlu0 %394
      %vm396 = vcmask 785408
      %v397 = vsel %vm396, %v391, %v393
      %v398 = vsel %vm396, %v393, %v395
      %v401 = vsel %vm339, 0.0, %v397
      %v402 = vsel %vm340, 0.0, %v398
      %403 = vrot.lane.b32.xlu0 %v333, 94
      %v404 = vpop.permute.xlu0 %403
      %405 = vrot.lane.b32.xlu0 %v329, 94
      %v406 = vpop.permute.xlu0 %405
      %407 = vrot.lane.b32.xlu0 %v334, 94
      %v408 = vpop.permute.xlu0 %407
      %vm409 = vcmask 769024
      %v410 = vsel %vm409, %v404, %v406
      %v411 = vsel %vm409, %v406, %v408
      %v414 = vsel %vm347, 0.0, %v410
      %v415 = vsel %vm348, 0.0, %v411
      %416 = vrot.lane.b32.xlu0 %v333, 127
      %v417 = vpop.permute.xlu0 %416
      %418 = vrot.lane.b32.xlu0 %v329, 127
      %v419 = vpop.permute.xlu0 %418
      %420 = vrot.lane.b32.xlu0 %v334, 127
      %v421 = vpop.permute.xlu0 %420
      %vm422 = vcmask 1039360
      %v423 = vsel %vm422, %v417, %v419
      %v424 = vsel %vm422, %v419, %v421
      %427 = vrot.lane.b32.xlu0 %v333, 111
      %v428 = vpop.permute.xlu0 %427
      %429 = vrot.lane.b32.xlu0 %v329, 111
      %v430 = vpop.permute.xlu0 %429
      %431 = vrot.lane.b32.xlu0 %v334, 111
      %v432 = vpop.permute.xlu0 %431
      %vm433 = vcmask 908288
      %v434 = vsel %vm433, %v428, %v430
      %v435 = vsel %vm433, %v430, %v432
      %438 = vrot.lane.b32.xlu0 %v333, 95
      %v439 = vpop.permute.xlu0 %438
      %440 = vrot.lane.b32.xlu0 %v329, 95
      %v441 = vpop.permute.xlu0 %440
      %442 = vrot.lane.b32.xlu0 %v334, 95
      %v443 = vpop.permute.xlu0 %442
      %vm444 = vcmask 777216
      %v445 = vsel %vm444, %v439, %v441
      %v446 = vsel %vm444, %v441, %v443
      %v449 = vpack.c.bf16 %v423, %v341
      %v450 = vpack.c.bf16 %v424, %v342
      %v451 = vpack.c.bf16 %v375, %v362
      %v452 = vpack.c.bf16 %v376, %v363
      %v453 = vpack.c.bf16 %v388, %v434
      %v454 = vpack.c.bf16 %v389, %v435
      %v455 = vpack.c.bf16 %v445, %v401
      %v456 = vpack.c.bf16 %v446, %v402
      %v457 = vpack.c.bf16 %v414, %v414
      %v458 = vpack.c.bf16 %v415, %v415
      %vm459 = vcmask 588800
      %v461 = vsel %vm459, %v321, 0
      %vm463 = vcmask 1043456
      %v465 = vsel %vm463, %v457, 0
      %v468 = vsel %vm463, %v458, 0
      %470 = vmatprep.subr.bf16.mxu0 %v450
      %471 = vmatpush1.bf16.msra.mxu0 %v449
      %472 = vmatprep.subr.bf16.mxu0 %v452
      %473 = vmatpush1.bf16.msra.mxu0 %v451
      %474 = vmatprep.subr.bf16.mxu0 %v454
      %475 = vmatpush1.bf16.msra.mxu0 %v453
      %476 = vmatprep.subr.bf16.mxu0 %v456
      %477 = vmatpush1.bf16.msra.mxu0 %v455
      %478 = vmatprep.subr.bf16.mxu0 %v468
      %479 = vmatpush1.bf16.msra.mxu0 %v465
      %480 = vmatprep.subr.bf16.mxu0 0
      %481 = vmatpush1.bf16.msra.mxu0 0
      %482 = vmatprep.subr.bf16.mxu0 0
      %483 = vmatpush1.bf16.msra.mxu0 0
      %484 = vmatprep.subr.bf16.mxu0 0
      %485 = vmatpush1.bf16.msra.mxu0 0
      %486 = vmatprep.subr.bf16.mxu0 0
      %487 = vmatpush1.bf16.msra.mxu0 0
      %488 = vmatprep.subr.bf16.mxu0 0
      %489 = vmatpush1.bf16.msra.mxu0 0
      %490 = vmatprep.subr.bf16.mxu0 0
      %491 = vmatpush1.bf16.msra.mxu0 0
      %492 = vmatprep.subr.bf16.mxu0 0
      %493 = vmatpush1.bf16.msra.mxu0 0
      %494 = vmatprep.subr.bf16.mxu0 0
      %495 = vmatpush1.bf16.msra.mxu0 0
      %496 = vmatprep.subr.bf16.mxu0 0
      %497 = vmatpush1.bf16.msra.mxu0 0
      %498 = vmatprep.subr.bf16.mxu0 0
      %499 = vmatpush1.bf16.msra.mxu0 0
      %500 = vmatprep.subr.bf16.mxu0 0
      %501 = vmatpush1.bf16.msra.mxu0 0
      %502 = vmatprep.mubr.bf16.mxu0 0
      %503 = vmatmul.mubr.bf16.gmra.mrb[0].mxu0 %v461
      %v504 = vpop.f32.mrb[0].mxu0
      %v505 = vadd.f32 0.0, %v504
      %v506 = vpop.f32.mrb[0].mxu0
      %v507 = vadd.f32 0.0, %v506
      %v508 = vpop.f32.mrb[0].mxu0
      %v509 = vpop.f32.mrb[0].mxu0
      %510 = vdwg.mxu0
      %511 = vst [vmem:[%s264] sm:$0xff] %v505
      %512 = vst [vmem:[%s264 + $0x8] sm:$0xff] %v507
      %v513 = vadd.f32 %v505, %v507
      %514 = vadd.xlane.f32.xlu0 %v513
      %v515 = vpop.xlane.xlu0 %514
      %v516 = vrcp.pop 256.0
      %v517 = vmul.f32 %v515, %v516
      %v518 = vsub.f32 %v505, %v517
      %v519 = vsub.f32 %v507, %v517
      %v520 = vmul.f32 %v518, %v518
      %v521 = vmul.f32 %v519, %v519
      %v522 = vadd.f32 %v520, %v521
      %523 = vadd.xlane.f32.xlu0 %v522
      %v524 = vpop.xlane.xlu0 %523
      %vm525 = vcmask 7168
      %526 = vst.msk [vmem:[%s268] sm:$0xff] %vm525, %v517
      %527 = vst.msk [vmem:[%s272] sm:$0xff] %vm525, %v524
      %p528 = scmp.lt.s32.totalorder %s18, 1
      %s529 = scalar_select %p528, %s18, 1
      %s530 = smul.addr %s529, 2
      %s531 = smul.addr %s530, 8
      %s532 = scalar_lea.vmem %s4, %s531
      %p533 = scmp.lt.s32.totalorder %s18, 1
      %s534 = scalar_select %p533, %s18, 1
      %s535 = smul.addr %s534, 8
      %s536 = scalar_lea.vmem %s5, %s535
      %p537 = scmp.lt.s32.totalorder %s18, 1
      %s538 = scalar_select %p537, %s18, 1
      %s539 = smul.addr %s538, 8
      %s540 = scalar_lea.vmem %s6, %s539
      // Predicated region
      $region37: #{preact_basic_block.4} parent=35 // pred_check
        %p541 = pneg %p125
      $region38: #{preact_basic_block.4} parent=35 // pred_check_branch
        %543 = sbr.rel (%p541) target = $region40
      $region39: #{preact_basic_block.4} parent=35 // pred_region
        _
      $region40: #{preact_basic_block.4} parent=35 // pred_fallthru
        _
      // Predicated region
      $region41: #{preact_basic_block.4} parent=35 // pred_check
        %p544 = pneg %p151
      $region42: #{preact_basic_block.4} parent=35 // pred_check_branch
        %546 = sbr.rel (%p544) target = $region44
      $region43: #{preact_basic_block.4} parent=35 // pred_region
        _
      $region44: #{preact_basic_block.4} parent=35 // pred_fallthru
        _
      // Predicated region
      $region45: #{preact_basic_block.4} parent=35 // pred_check
        %p547 = pneg %p177
      $region46: #{preact_basic_block.4} parent=35 // pred_check_branch
        %549 = sbr.rel (%p547) target = $region48
      $region47: #{preact_basic_block.4} parent=35 // pred_region
        _
      $region48: #{preact_basic_block.4} parent=35 // pred_fallthru
        _
    $region36: #{preact_basic_block.4} parent=5 // pred_fallthru
      _
    %p550 = scmp.le.s32.totalorder 2, %s13
    // Predicated region
    $region49: #{preact_basic_block.4} parent=5 // pred_check
      %p551 = pneg %p550
    $region50: #{preact_basic_block.4} parent=5 // pred_check_branch
      %553 = sbr.rel (%p551) target = $region52
    $region51: #{preact_basic_block.4} parent=5 // pred_region
      %s554 = ssub.s32 %s13, 2
      // Predicated region
      $region53: #{preact_basic_block.4} parent=51 // pred_check
        %p555 = pneg %p131
      $region54: #{preact_basic_block.4} parent=51 // pred_check_branch
        %557 = sbr.rel (%p555) target = $region56
      $region55: #{preact_basic_block.4} parent=51 // pred_region
        %p558 = scmp.lt.s32.totalorder %s19, 1
        %s559 = scalar_select %p558, %s19, 1
        %s560 = smul.addr %s559, 2
        %s561 = smul.addr %s560, 8
        %s562 = scalar_lea.vmem %s4, %s561
      $region56: #{preact_basic_block.4} parent=51 // pred_fallthru
        _
      // Predicated region
      $region57: #{preact_basic_block.4} parent=51 // pred_check
        %p563 = pneg %p157
      $region58: #{preact_basic_block.4} parent=51 // pred_check_branch
        %565 = sbr.rel (%p563) target = $region60
      $region59: #{preact_basic_block.4} parent=51 // pred_region
        %p566 = scmp.lt.s32.totalorder %s19, 1
        %s567 = scalar_select %p566, %s19, 1
        %s568 = smul.addr %s567, 8
        %s569 = scalar_lea.vmem %s5, %s568
      $region60: #{preact_basic_block.4} parent=51 // pred_fallthru
        _
      // Predicated region
      $region61: #{preact_basic_block.4} parent=51 // pred_check
        %p570 = pneg %p183
      $region62: #{preact_basic_block.4} parent=51 // pred_check_branch
        %572 = sbr.rel (%p570) target = $region64
      $region63: #{preact_basic_block.4} parent=51 // pred_region
        %p573 = scmp.lt.s32.totalorder %s19, 1
        %s574 = scalar_select %p573, %s19, 1
        %s575 = smul.addr %s574, 8
        %s576 = scalar_lea.vmem %s6, %s575
      $region64: #{preact_basic_block.4} parent=51 // pred_fallthru
        _
    $region52: #{preact_basic_block.4} parent=5 // pred_fallthru
      _
  $region6: #{preact_basic_block.4} parent=0 // loop_footer
    %s17 = sadd.s32 1, %s13
  $region7: #{preact_basic_block.4} parent=0 // loop_footer_branch
    %12 = sbr.rel target = $region3
  $region8: #{preact_basic_block.4} parent=0 // loop_exit
    _

// kernel: preact_basic_block.5
$region0: #{preact_basic_block.5}
  #allocation0 [shape = 'u32[]', space=smem, size = 0x4, offset = 0x4, fixed_abs, tag = 'smem constant byte address 0x4 - core index']
  #allocation1 [shape = 'u32[144,128]{1,0:T(1,128)}', space=vmem, size = 0x12000, scoped, tag = 'internal scratch']
  %s0 = inlined_call_operand.vmem [shape: f32[2,8,256], index: 0, kind: input, shape index: {}]
  %s1 = inlined_call_operand.vmem [shape: f32[2,8,256], index: 1, kind: input, shape index: {}]
  %s2 = inlined_call_operand.vmem [shape: f32[8,1], index: 2, kind: input, shape index: {}]
  %s3 = inlined_call_operand.vmem [shape: f32[8,1], index: 3, kind: input, shape index: {}]
  %s4 = inlined_call_operand.vmem [shape: bf16[8,72], index: 4, kind: input, shape index: {}]
  %s5 = inlined_call_operand.vmem [shape: f32[2,8,256], index: 5, kind: output, shape index: {}]
  %s6 = sld [smem:[#allocation0]]
  $region53: #{preact_basic_block.5} parent=0
    _
  %s8 = ssub.s32 1, %s6
  %s9 = scalar_select 0, %s8, %s6
  loop: start=0, step=1, limit=4
  $region2: #{preact_basic_block.5} parent=0 // loop_pre_header
    _
  $region3: #{preact_basic_block.5} parent=0 // loop_header
    %s11 = sphi 0, %s15
    %p12 = scmp.ge.s32.totalorder %s11, 4
    %s21 = sphi 0, %s23
    %s24 = sphi 0, %s21
    %s25 = sphi 0, %s24
    %s41 = sphi 0, %s25
    %s47 = sphi 0, %s49
    %s50 = sphi 0, %s47
    %s51 = sphi 0, %s50
    %s67 = sphi 0, %s51
    %s71 = sphi 0, %s71
    %s73 = sphi 0, %s71
    %s74 = sphi 0, %s73
    %s88 = sphi 0, %s74
    %s92 = sphi 0, %s92
    %s94 = sphi 0, %s92
    %s95 = sphi 0, %s94
    %s109 = sphi 0, %s95
    %s113 = sphi 0, %s113
    %s115 = sphi 0, %s113
    %s116 = sphi 0, %s115
    %s130 = sphi 0, %s116
    %s136 = sphi 0, %s138
    %s139 = sphi 0, %s136
    %s140 = sphi 0, %s139
    %s156 = sphi 0, %s140
  $region4: #{preact_basic_block.5} parent=0 // loop_header_branch
    %14 = sbr.rel (%p12) target = $region8
  $region5: #{preact_basic_block.5} parent=0 // loop_body
    %s16 = ssub.s32 %s11, 1
    %s17 = ssub.s32 %s11, 2
    %s18 = sadd.s32 %s11, 1
    %s19 = ssub.s32 %s11, %s18
    %p20 = scmp.eq.s32.totalorder %s19, 0
    %s22 = sadd.s32 %s21, 1
    %s23 = scalar_select %p20, %s21, %s22
    %p26 = pneg %p20
    %p27 = scmp.eq.s32.totalorder %s11, 1
    %p28 = por %p26, %p27
    %p29 = scmp.ne.s32.totalorder %s21, %s24
    %p30 = scmp.eq.s32.totalorder %s11, 0
    %p31 = por %p29, %p30
    %p32 = scmp.ne.s32.totalorder %s21, %s24
    %p33 = scmp.eq.s32.totalorder %s16, 1
    %p34 = por %p32, %p33
    %p35 = scmp.ne.s32.totalorder %s24, %s25
    %p36 = scmp.eq.s32.totalorder %s16, 0
    %p37 = por %p35, %p36
    %p38 = scmp.ne.s32.totalorder %s24, %s25
    %p39 = scmp.eq.s32.totalorder %s17, 1
    %p40 = por %p38, %p39
    %p42 = scmp.ne.s32.totalorder %s25, %s41
    %p43 = scmp.eq.s32.totalorder %s17, 0
    %p44 = por %p42, %p43
    %s45 = ssub.s32 %s11, %s18
    %p46 = scmp.eq.s32.totalorder %s45, 0
    %s48 = sadd.s32 %s47, 1
    %s49 = scalar_select %p46, %s47, %s48
    %p52 = pneg %p46
    %p53 = scmp.eq.s32.totalorder %s11, 1
    %p54 = por %p52, %p53
    %p55 = scmp.ne.s32.totalorder %s47, %s50
    %p56 = scmp.eq.s32.totalorder %s11, 0
    %p57 = por %p55, %p56
    %p58 = scmp.ne.s32.totalorder %s47, %s50
    %p59 = scmp.eq.s32.totalorder %s16, 1
    %p60 = por %p58, %p59
    %p61 = scmp.ne.s32.totalorder %s50, %s51
    %p62 = scmp.eq.s32.totalorder %s16, 0
    %p63 = por %p61, %p62
    %p64 = scmp.ne.s32.totalorder %s50, %s51
    %p65 = scmp.eq.s32.totalorder %s17, 1
    %p66 = por %p64, %p65
    %p68 = scmp.ne.s32.totalorder %s51, %s67
    %p69 = scmp.eq.s32.totalorder %s17, 0
    %p70 = por %p68, %p69
    %s72 = sadd.s32 %s71, 1
    %p75 = scmp.eq.s32.totalorder %s11, 1
    %p76 = scmp.ne.s32.totalorder %s71, %s73
    %p77 = scmp.eq.s32.totalorder %s11, 0
    %p78 = por %p76, %p77
    %p79 = scmp.ne.s32.totalorder %s71, %s73
    %p80 = scmp.eq.s32.totalorder %s16, 1
    %p81 = por %p79, %p80
    %p82 = scmp.ne.s32.totalorder %s73, %s74
    %p83 = scmp.eq.s32.totalorder %s16, 0
    %p84 = por %p82, %p83
    %p85 = scmp.ne.s32.totalorder %s73, %s74
    %p86 = scmp.eq.s32.totalorder %s17, 1
    %p87 = por %p85, %p86
    %p89 = scmp.ne.s32.totalorder %s74, %s88
    %p90 = scmp.eq.s32.totalorder %s17, 0
    %p91 = por %p89, %p90
    %s93 = sadd.s32 %s92, 1
    %p96 = scmp.eq.s32.totalorder %s11, 1
    %p97 = scmp.ne.s32.totalorder %s92, %s94
    %p98 = scmp.eq.s32.totalorder %s11, 0
    %p99 = por %p97, %p98
    %p100 = scmp.ne.s32.totalorder %s92, %s94
    %p101 = scmp.eq.s32.totalorder %s16, 1
    %p102 = por %p100, %p101
    %p103 = scmp.ne.s32.totalorder %s94, %s95
    %p104 = scmp.eq.s32.totalorder %s16, 0
    %p105 = por %p103, %p104
    %p106 = scmp.ne.s32.totalorder %s94, %s95
    %p107 = scmp.eq.s32.totalorder %s17, 1
    %p108 = por %p106, %p107
    %p110 = scmp.ne.s32.totalorder %s95, %s109
    %p111 = scmp.eq.s32.totalorder %s17, 0
    %p112 = por %p110, %p111
    %s114 = sadd.s32 %s113, 1
    %p117 = scmp.eq.s32.totalorder %s11, 1
    %p118 = scmp.ne.s32.totalorder %s113, %s115
    %p119 = scmp.eq.s32.totalorder %s11, 0
    %p120 = por %p118, %p119
    %p121 = scmp.ne.s32.totalorder %s113, %s115
    %p122 = scmp.eq.s32.totalorder %s16, 1
    %p123 = por %p121, %p122
    %p124 = scmp.ne.s32.totalorder %s115, %s116
    %p125 = scmp.eq.s32.totalorder %s16, 0
    %p126 = por %p124, %p125
    %p127 = scmp.ne.s32.totalorder %s115, %s116
    %p128 = scmp.eq.s32.totalorder %s17, 1
    %p129 = por %p127, %p128
    %p131 = scmp.ne.s32.totalorder %s116, %s130
    %p132 = scmp.eq.s32.totalorder %s17, 0
    %p133 = por %p131, %p132
    %s134 = ssub.s32 %s11, %s18
    %p135 = scmp.eq.s32.totalorder %s134, 0
    %s137 = sadd.s32 %s136, 1
    %s138 = scalar_select %p135, %s136, %s137
    %p141 = pneg %p135
    %p142 = scmp.eq.s32.totalorder %s11, 1
    %p143 = por %p141, %p142
    %p144 = scmp.ne.s32.totalorder %s136, %s139
    %p145 = scmp.eq.s32.totalorder %s11, 0
    %p146 = por %p144, %p145
    %p147 = scmp.ne.s32.totalorder %s136, %s139
    %p148 = scmp.eq.s32.totalorder %s16, 1
    %p149 = por %p147, %p148
    %p150 = scmp.ne.s32.totalorder %s139, %s140
    %p151 = scmp.eq.s32.totalorder %s16, 0
    %p152 = por %p150, %p151
    %p153 = scmp.ne.s32.totalorder %s139, %s140
    %p154 = scmp.eq.s32.totalorder %s17, 1
    %p155 = por %p153, %p154
    %p157 = scmp.ne.s32.totalorder %s140, %s156
    %p158 = scmp.eq.s32.totalorder %s17, 0
    %p159 = por %p157, %p158
    %p160 = scmp.le.s32.totalorder 1, %s11
    %p161 = scmp.lt.s32.totalorder %s11, 3
    %p162 = pnand %p160, %p161
    %p163 = pneg %p162
    // Predicated region
    $region9: #{preact_basic_block.5} parent=5 // pred_check
      _
    $region10: #{preact_basic_block.5} parent=5 // pred_check_branch
      %165 = sbr.rel (%p162) target = $region12
    $region11: #{preact_basic_block.5} parent=5 // pred_region
      %s166 = ssub.s32 %s11, 1
      // Predicated region
      $region13: #{preact_basic_block.5} parent=11 // pred_check
        %p167 = pneg %p84
      $region14: #{preact_basic_block.5} parent=11 // pred_check_branch
        %169 = sbr.rel (%p167) target = $region16
      $region15: #{preact_basic_block.5} parent=11 // pred_region
        _
      $region16: #{preact_basic_block.5} parent=11 // pred_fallthru
        _
      // Predicated region
      $region17: #{preact_basic_block.5} parent=11 // pred_check
        %p170 = pneg %p105
      $region18: #{preact_basic_block.5} parent=11 // pred_check_branch
        %172 = sbr.rel (%p170) target = $region20
      $region19: #{preact_basic_block.5} parent=11 // pred_region
        _
      $region20: #{preact_basic_block.5} parent=11 // pred_fallthru
        _
      // Predicated region
      $region21: #{preact_basic_block.5} parent=11 // pred_check
        %p173 = pneg %p126
      $region22: #{preact_basic_block.5} parent=11 // pred_check_branch
        %175 = sbr.rel (%p173) target = $region24
      $region23: #{preact_basic_block.5} parent=11 // pred_region
        _
      $region24: #{preact_basic_block.5} parent=11 // pred_fallthru
        _
    $region12: #{preact_basic_block.5} parent=5 // pred_fallthru
      _
    %p176 = scmp.lt.s32.totalorder %s11, 2
    // Predicated region
    $region25: #{preact_basic_block.5} parent=5 // pred_check
      %p177 = pneg %p176
    $region26: #{preact_basic_block.5} parent=5 // pred_check_branch
      %179 = sbr.rel (%p177) target = $region28
    $region27: #{preact_basic_block.5} parent=5 // pred_region
      // Predicated region
      $region29: #{preact_basic_block.5} parent=27 // pred_check
        %p180 = pneg %p31
      $region30: #{preact_basic_block.5} parent=27 // pred_check_branch
        %182 = sbr.rel (%p180) target = $region32
      $region31: #{preact_basic_block.5} parent=27 // pred_region
        %p183 = scmp.lt.s32.totalorder %s11, 1
        %s184 = scalar_select %p183, %s11, 1
        %s185 = smul.addr %s184, 2
        %s186 = smul.addr %s185, 8
        %s187 = scalar_lea.vmem %s0, %s186
      $region32: #{preact_basic_block.5} parent=27 // pred_fallthru
        _
      // Predicated region
      $region33: #{preact_basic_block.5} parent=27 // pred_check
        %p188 = pneg %p57
      $region34: #{preact_basic_block.5} parent=27 // pred_check_branch
        %190 = sbr.rel (%p188) target = $region36
      $region35: #{preact_basic_block.5} parent=27 // pred_region
        %p191 = scmp.lt.s32.totalorder %s11, 1
        %s192 = scalar_select %p191, %s11, 1
        %s193 = smul.addr %s192, 2
        %s194 = smul.addr %s193, 8
        %s195 = scalar_lea.vmem %s1, %s194
      $region36: #{preact_basic_block.5} parent=27 // pred_fallthru
        _
    $region28: #{preact_basic_block.5} parent=5 // pred_fallthru
      _
    %p196 = scmp.le.s32.totalorder 1, %s11
    %p197 = scmp.lt.s32.totalorder %s11, 3
    %p198 = pnand %p196, %p197
    %p199 = pneg %p198
    // Predicated region
    $region37: #{preact_basic_block.5} parent=5 // pred_check
      _
    $region38: #{preact_basic_block.5} parent=5 // pred_check_branch
      %201 = sbr.rel (%p198) target = $region40
    $region39: #{preact_basic_block.5} parent=5 // pred_region
      %s202 = ssub.s32 %s11, 1
      %p203 = scmp.lt.s32.totalorder %s16, 1
      %s204 = scalar_select %p203, %s16, 1
      %s205 = smul.addr %s204, 2
      %s206 = smul.addr %s205, 8
      %s207 = scalar_lea.vmem %s0, %s206
      %p208 = pneg %p37
      %p209 = pneg %p34
      %p210 = scmp.lt.s32.totalorder %s16, 1
      %s211 = scalar_select %p210, %s16, 1
      %s212 = smul.addr %s211, 2
      %s213 = smul.addr %s212, 8
      %s214 = scalar_lea.vmem %s1, %s213
      %p215 = pneg %p63
      %p216 = pneg %p60
      %p217 = pneg %p84
      %p218 = pneg %p81
      %p219 = pneg %p105
      %p220 = pneg %p102
      %p221 = pneg %p126
      %p222 = pneg %p123
      %p223 = pneg %p152
      %p224 = pneg %p149
      %p225 = scmp.lt.s32.totalorder %s16, 1
      %s226 = scalar_select %p225, %s16, 1
      %s227 = smul.addr %s226, 2
      %s228 = smul.addr %s227, 8
      %s229 = scalar_lea.vmem %s5, %s228
      %p230 = scmp.lt.s32.totalorder %s16, 1
      %s231 = scalar_select %p230, %s16, 1
      %s232 = smul.addr %s231, 2
      %s233 = smul.addr %s232, 8
      %s234 = scalar_lea.vmem %s0, %s233
      %p235 = scmp.lt.s32.totalorder %s16, 1
      %s236 = scalar_select %p235, %s16, 1
      %s237 = smul.addr %s236, 2
      %s238 = smul.addr %s237, 8
      %s239 = scalar_lea.vmem %s1, %s238
      %p240 = scmp.lt.s32.totalorder %s16, 1
      %s241 = scalar_select %p240, %s16, 1
      %s242 = smul.addr %s241, 2
      %s243 = smul.addr %s242, 8
      %s244 = scalar_lea.vmem %s5, %s243
      %v246 = vld [vmem:[%s234] sm:$0xff]
      %v247 = vld [vmem:[%s234 + $0x8] sm:$0xff]
      %v248 = vld [vmem:[%s2] sm:$0xff]
      %250 = vset.pattern.permute.xlu0 0
      %251 = vperm.xlu0 %250, %v248
      %v252 = vpop.permute.xlu0 %251
      %v254 = vmul.f32 %v246, %v252
      %v255 = vmul.f32 %v247, %v252
      %v256 = vld [vmem:[%s3] sm:$0xff]
      %258 = vset.pattern.permute.xlu0 0
      %259 = vperm.xlu0 %258, %v256
      %v260 = vpop.permute.xlu0 %259
      %v262 = vadd.f32 %v254, %v260
      %v263 = vadd.f32 %v255, %v260
      %v264 = vmax.f32 %v262, 0.0
      %v265 = vmax.f32 %v263, 0.0
      %v266 = vlaneseq
      %v267 = vand.u32 %v266, 127
      %v268 = vadd.s32 %v267, 128
      %vm269 = vcmp.lt.s32.totalorder %v267, 0
      %v270 = vsub.s32 0, %v267
      %v271 = vsel %vm269, %v270, %v267
      %v272 = vshrl.u32 %v271, 4
      %v273 = vand.u32 %v271, 15
      %v274 = vsub.s32 0, %v273
      %v275 = vsel %vm269, %v274, %v273
      %vm276 = vcmp.lt.s32.totalorder %v268, 0
      %v277 = vsub.s32 0, %v268
      %v278 = vsel %vm276, %v277, %v268
      %v279 = vshrl.u32 %v278, 4
      %v280 = vand.u32 %v278, 15
      %v281 = vsub.s32 0, %v280
      %v282 = vsel %vm276, %v281, %v280
      %vm283 = vcmp.ne.s32.totalorder %v275, 0
      %vm284 = vcmp.ne.s32.totalorder %v282, 0
      %vm285 = vcmp.lt.s32.totalorder %v275, 0
      %vm286 = vcmp.lt.s32.totalorder %v282, 0
      %vm287 = vmand %vm285, %vm283
      %vm288 = vmand %vm286, %vm284
      %v289 = vadd.s32 %v275, 16
      %v290 = vadd.s32 %v282, 16
      %v291 = vsel %vm287, %v289, %v275
      %v292 = vsel %vm288, %v290, %v282
      %v293 = vld [vmem:[%s4] sm:$0xf]
      %296 = vrot.lane.b32.xlu0 %v264, 17
      %v297 = vpop.permute.xlu0 %296
      %298 = vrot.lane.b32.xlu0 %v265, 17
      %v299 = vpop.permute.xlu0 %298
      %vm300 = vcmask 138240
      %v301 = vsel %vm300, %v297, %v299
      %v305 = vsel %vm300, 0.0, %v297
      %v306 = vsel %vm300, %v299, 0.0
      %vm307 = vcmp.eq.s32.totalorder %v291, 0
      %vm308 = vcmp.eq.s32.totalorder %v292, 0
      %v309 = vsel %vm307, 1, 0
      %v310 = vsel %vm308, 1, 0
      %vm311 = vcmp.eq.s32.totalorder %v309, 1
      %vm312 = vcmp.eq.s32.totalorder %v310, 1
      %v313 = vsel %vm311, 0.0, %v305
      %v314 = vsel %vm312, 0.0, %v301
      %vm315 = vcmp.eq.s32.totalorder %v291, 15
      %vm316 = vcmp.eq.s32.totalorder %v292, 15
      %v317 = vsel %vm315, 1, 0
      %v318 = vsel %vm316, 1, 0
      %vm319 = vcmp.eq.s32.totalorder %v317, 1
      %vm320 = vcmp.eq.s32.totalorder %v318, 1
      %323 = vrot.lane.b32.xlu0 %v305, 126
      %v324 = vpop.permute.xlu0 %323
      %325 = vrot.lane.b32.xlu0 %v301, 126
      %v326 = vpop.permute.xlu0 %325
      %327 = vrot.lane.b32.xlu0 %v306, 126
      %v328 = vpop.permute.xlu0 %327
      %vm329 = vcmask 1031168
      %v330 = vsel %vm329, %v324, %v326
      %v331 = vsel %vm329, %v326, %v328
      %v334 = vsel %vm319, 0.0, %v330
      %v335 = vsel %vm320, 0.0, %v331
      %336 = vrot.lane.b32.xlu0 %v305, 112
      %v337 = vpop.permute.xlu0 %336
      %338 = vrot.lane.b32.xlu0 %v301, 112
      %v339 = vpop.permute.xlu0 %338
      %340 = vrot.lane.b32.xlu0 %v306, 112
      %v341 = vpop.permute.xlu0 %340
      %vm342 = vcmask 916480
      %v343 = vsel %vm342, %v337, %v339
      %v344 = vsel %vm342, %v339, %v341
      %v347 = vsel %vm311, 0.0, %v343
      %v348 = vsel %vm312, 0.0, %v344
      %349 = vrot.lane.b32.xlu0 %v305, 110
      %v350 = vpop.permute.xlu0 %349
      %351 = vrot.lane.b32.xlu0 %v301, 110
      %v352 = vpop.permute.xlu0 %351
      %353 = vrot.lane.b32.xlu0 %v306, 110
      %v354 = vpop.permute.xlu0 %353
      %vm355 = vcmask 900096
      %v356 = vsel %vm355, %v350, %v352
      %v357 = vsel %vm355, %v352, %v354
      %v360 = vsel %vm319, 0.0, %v356
      %v361 = vsel %vm320, 0.0, %v357
      %362 = vrot.lane.b32.xlu0 %v305, 96
      %v363 = vpop.permute.xlu0 %362
      %364 = vrot.lane.b32.xlu0 %v301, 96
      %v365 = vpop.permute.xlu0 %364
      %366 = vrot.lane.b32.xlu0 %v306, 96
      %v367 = vpop.permute.xlu0 %366
      %vm368 = vcmask 785408
      %v369 = vsel %vm368, %v363, %v365
      %v370 = vsel %vm368, %v365, %v367
      %v373 = vsel %vm311, 0.0, %v369
      %v374 = vsel %vm312, 0.0, %v370
      %375 = vrot.lane.b32.xlu0 %v305, 94
      %v376 = vpop.permute.xlu0 %375
      %377 = vrot.lane.b32.xlu0 %v301, 94
      %v378 = vpop.permute.xlu0 %377
      %379 = vrot.lane.b32.xlu0 %v306, 94
      %v380 = vpop.permute.xlu0 %379
      %vm381 = vcmask 769024
      %v382 = vsel %vm381, %v376, %v378
      %v383 = vsel %vm381, %v378, %v380
      %v386 = vsel %vm319, 0.0, %v382
      %v387 = vsel %vm320, 0.0, %v383
      %388 = vrot.lane.b32.xlu0 %v305, 127
      %v389 = vpop.permute.xlu0 %388
      %390 = vrot.lane.b32.xlu0 %v301, 127
      %v391 = vpop.permute.xlu0 %390
      %392 = vrot.lane.b32.xlu0 %v306, 127
      %v393 = vpop.permute.xlu0 %392
      %vm394 = vcmask 1039360
      %v395 = vsel %vm394, %v389, %v391
      %v396 = vsel %vm394, %v391, %v393
      %399 = vrot.lane.b32.xlu0 %v305, 111
      %v400 = vpop.permute.xlu0 %399
      %401 = vrot.lane.b32.xlu0 %v301, 111
      %v402 = vpop.permute.xlu0 %401
      %403 = vrot.lane.b32.xlu0 %v306, 111
      %v404 = vpop.permute.xlu0 %403
      %vm405 = vcmask 908288
      %v406 = vsel %vm405, %v400, %v402
      %v407 = vsel %vm405, %v402, %v404
      %410 = vrot.lane.b32.xlu0 %v305, 95
      %v411 = vpop.permute.xlu0 %410
      %412 = vrot.lane.b32.xlu0 %v301, 95
      %v413 = vpop.permute.xlu0 %412
      %414 = vrot.lane.b32.xlu0 %v306, 95
      %v415 = vpop.permute.xlu0 %414
      %vm416 = vcmask 777216
      %v417 = vsel %vm416, %v411, %v413
      %v418 = vsel %vm416, %v413, %v415
      %v421 = vpack.c.bf16 %v395, %v313
      %v422 = vpack.c.bf16 %v396, %v314
      %v423 = vpack.c.bf16 %v347, %v334
      %v424 = vpack.c.bf16 %v348, %v335
      %v425 = vpack.c.bf16 %v360, %v406
      %v426 = vpack.c.bf16 %v361, %v407
      %v427 = vpack.c.bf16 %v417, %v373
      %v428 = vpack.c.bf16 %v418, %v374
      %v429 = vpack.c.bf16 %v386, %v386
      %v430 = vpack.c.bf16 %v387, %v387
      %v431 = vld [vmem:[%s239] sm:$0xff]
      %v432 = vld [vmem:[%s239 + $0x8] sm:$0xff]
      %vm433 = vcmask 588800
      %v435 = vsel %vm433, %v293, 0
      %vm437 = vcmask 1043456
      %v439 = vsel %vm437, %v429, 0
      %v442 = vsel %vm437, %v430, 0
      %444 = vmatprep.subr.bf16.mxu0 %v422
      %445 = vmatpush1.bf16.msra.mxu0 %v421
      %446 = vmatprep.subr.bf16.mxu0 %v424
      %447 = vmatpush1.bf16.msra.mxu0 %v423
      %448 = vmatprep.subr.bf16.mxu0 %v426
      %449 = vmatpush1.bf16.msra.mxu0 %v425
      %450 = vmatprep.subr.bf16.mxu0 %v428
      %451 = vmatpush1.bf16.msra.mxu0 %v427
      %452 = vmatprep.subr.bf16.mxu0 %v442
      %453 = vmatpush1.bf16.msra.mxu0 %v439
      %454 = vmatprep.subr.bf16.mxu0 0
      %455 = vmatpush1.bf16.msra.mxu0 0
      %456 = vmatprep.subr.bf16.mxu0 0
      %457 = vmatpush1.bf16.msra.mxu0 0
      %458 = vmatprep.subr.bf16.mxu0 0
      %459 = vmatpush1.bf16.msra.mxu0 0
      %460 = vmatprep.subr.bf16.mxu0 0
      %461 = vmatpush1.bf16.msra.mxu0 0
      %462 = vmatprep.subr.bf16.mxu0 0
      %463 = vmatpush1.bf16.msra.mxu0 0
      %464 = vmatprep.subr.bf16.mxu0 0
      %465 = vmatpush1.bf16.msra.mxu0 0
      %466 = vmatprep.subr.bf16.mxu0 0
      %467 = vmatpush1.bf16.msra.mxu0 0
      %468 = vmatprep.subr.bf16.mxu0 0
      %469 = vmatpush1.bf16.msra.mxu0 0
      %470 = vmatprep.subr.bf16.mxu0 0
      %471 = vmatpush1.bf16.msra.mxu0 0
      %472 = vmatprep.subr.bf16.mxu0 0
      %473 = vmatpush1.bf16.msra.mxu0 0
      %474 = vmatprep.subr.bf16.mxu0 0
      %475 = vmatpush1.bf16.msra.mxu0 0
      %476 = vmatprep.mubr.bf16.mxu0 0
      %477 = vmatmul.mubr.bf16.gmra.mrb[0].mxu0 %v435
      %v478 = vpop.f32.mrb[0].mxu0
      %v479 = vadd.f32 %v431, %v478
      %v480 = vpop.f32.mrb[0].mxu0
      %v481 = vadd.f32 %v432, %v480
      %v482 = vpop.f32.mrb[0].mxu0
      %v483 = vpop.f32.mrb[0].mxu0
      %484 = vdwg.mxu0
      %485 = vst [vmem:[%s244] sm:$0xff] %v479
      %486 = vst [vmem:[%s244 + $0x8] sm:$0xff] %v481
      %p487 = scmp.lt.s32.totalorder %s16, 1
      %s488 = scalar_select %p487, %s16, 1
      %s489 = smul.addr %s488, 2
      %s490 = smul.addr %s489, 8
      %s491 = scalar_lea.vmem %s5, %s490
      // Predicated region
      $region41: #{preact_basic_block.5} parent=39 // pred_check
        %p492 = pneg %p149
      $region42: #{preact_basic_block.5} parent=39 // pred_check_branch
        %494 = sbr.rel (%p492) target = $region44
      $region43: #{preact_basic_block.5} parent=39 // pred_region
        _
      $region44: #{preact_basic_block.5} parent=39 // pred_fallthru
        _
    $region40: #{preact_basic_block.5} parent=5 // pred_fallthru
      _
    %p495 = scmp.le.s32.totalorder 2, %s11
    // Predicated region
    $region45: #{preact_basic_block.5} parent=5 // pred_check
      %p496 = pneg %p495
    $region46: #{preact_basic_block.5} parent=5 // pred_check_branch
      %498 = sbr.rel (%p496) target = $region48
    $region47: #{preact_basic_block.5} parent=5 // pred_region
      %s499 = ssub.s32 %s11, 2
      // Predicated region
      $region49: #{preact_basic_block.5} parent=47 // pred_check
        %p500 = pneg %p155
      $region50: #{preact_basic_block.5} parent=47 // pred_check_branch
        %502 = sbr.rel (%p500) target = $region52
      $region51: #{preact_basic_block.5} parent=47 // pred_region
        %p503 = scmp.lt.s32.totalorder %s17, 1
        %s504 = scalar_select %p503, %s17, 1
        %s505 = smul.addr %s504, 2
        %s506 = smul.addr %s505, 8
        %s507 = scalar_lea.vmem %s5, %s506
      $region52: #{preact_basic_block.5} parent=47 // pred_fallthru
        _
    $region48: #{preact_basic_block.5} parent=5 // pred_fallthru
      _
  $region6: #{preact_basic_block.5} parent=0 // loop_footer
    %s15 = sadd.s32 1, %s11
  $region7: #{preact_basic_block.5} parent=0 // loop_footer_branch
    %10 = sbr.rel target = $region3
  $region8: #{preact_basic_block.5} parent=0 // loop_exit
    _

</llo_original>
